<compile_context>
chip_gen: v7x
topology: tpu7x:2x2x1
jax: 0.10.0
libtpu: 0.0.40
codegen_flags: <defaults>
</compile_context>

<pallas_src>
import functools
import math

import jax
import jax.numpy as jnp
from jax.experimental import pallas as pl
from jax.experimental.pallas import tpu as pltpu


# --------------------------------------------------------------------------------------
# Generation-aware VMEM budgeting
# --------------------------------------------------------------------------------------

def _vmem_capacity_bytes():
    try:
        info = pltpu.get_tpu_info()
        cap = getattr(info, "vmem_capacity_bytes", None)
        if cap:
            return int(cap)
    except Exception:
        pass
    return 64 * 1024 * 1024  # conservative fallback (v7x per-TC VMEM)


_VMEM_LIMIT = min(int(_vmem_capacity_bytes() * 3 // 4), 64 * 1024 * 1024)
_VMEM_BUDGET = int(_VMEM_LIMIT * 0.85)


def _cparams(n_axes):
    return pltpu.CompilerParams(
        dimension_semantics=("parallel",) * n_axes,
        vmem_limit_bytes=_VMEM_LIMIT,
    )


def _row_tile(rows, per_row_bytes, resident_bytes=0, requested=1024):
    """Pick a sublane-aligned row tile so that double-buffered row slabs plus the
    (conservatively x2-buffered) resident weights stay within the VMEM budget."""
    avail = max(_VMEM_BUDGET - 2 * resident_bytes, 512 * 1024)
    cap = max(8, avail // max(1, 2 * per_row_bytes))
    tile = min(requested, cap)
    if rows <= tile:
        return rows                       # full extent — always legal
    return max(8, (tile // 8) * 8)        # ragged tail handled by Pallas


# --------------------------------------------------------------------------------------
# Kernels
# --------------------------------------------------------------------------------------

def _layernorm_f32(x, g_ref, b_ref, eps):
    mu = jnp.mean(x, axis=-1, keepdims=True)
    xc = x - mu
    var = jnp.mean(xc * xc, axis=-1, keepdims=True)
    return (xc * jax.lax.rsqrt(var + eps) * g_ref[...].astype(jnp.float32)
            + b_ref[...].astype(jnp.float32))


def _ln_qkv_kernel(x_ref, g_ref, b_ref, w_ref, bias_ref, q_ref, k_ref, v_ref, *, eps, dout):
    # LayerNorm (f32) fused into one wide QKV matmul (bf16 operands, f32 accumulation).
    xn = _layernorm_f32(x_ref[...].astype(jnp.float32), g_ref, b_ref, eps)
    acc = jnp.dot(xn.astype(w_ref.dtype), w_ref[...], preferred_element_type=jnp.float32)
    acc = acc + bias_ref[...].astype(jnp.float32)
    q_ref[...] = acc[:, :dout].astype(q_ref.dtype)
    k_ref[...] = acc[:, dout:2 * dout].astype(k_ref.dtype)
    v_ref[...] = acc[:, 2 * dout:].astype(v_ref.dtype)


def _attention_kernel(q_ref, k_ref, v_ref, o_ref, *, heads, scale):
    # One (batch, query-tile) per grid step; all heads handled in-register so q/k/v/o stay in
    # their natural (S, D) layout (no HBM transposes) and the output store is lane-dense.
    q = q_ref[0]                    # (tq, D)  — bf16 matmul operands
    k = k_ref[0]                    # (S,  D)
    v = v_ref[0]
    dh = q.shape[-1] // heads
    outs = []
    for h in range(heads):
        sl = slice(h * dh, (h + 1) * dh)
        s = jax.lax.dot_general(q[:, sl], k[:, sl], (((1,), (1,)), ((), ())),
                                preferred_element_type=jnp.float32) * scale
        m = jnp.max(s, axis=-1, keepdims=True)      # softmax statistics stay f32
        p = jnp.exp(s - m)
        r = pl.reciprocal(jnp.sum(p, axis=-1, keepdims=True), approx=True)
        o_h = jnp.dot(p.astype(v.dtype), v[:, sl], preferred_element_type=jnp.float32) * r
        outs.append(o_h)
    o_ref[0] = jnp.concatenate(outs, axis=-1).astype(o_ref.dtype)   # one (tq, D) store


def _ln_swiglu_kernel(x_ref, g_ref, b_ref, w1_ref, b1_ref, w2_ref, b2_ref, o_ref, *, eps):
    # LayerNorm2 fused into fc1 (both halves) + SiLU gate.
    xn = _layernorm_f32(x_ref[...].astype(jnp.float32), g_ref, b_ref, eps)
    xc = xn.astype(w1_ref.dtype)
    h1 = (jnp.dot(xc, w1_ref[...], preferred_element_type=jnp.float32)
          + b1_ref[...].astype(jnp.float32))
    h2 = (jnp.dot(xc, w2_ref[...], preferred_element_type=jnp.float32)
          + b2_ref[...].astype(jnp.float32))
    gate = h1 * pl.reciprocal(1.0 + jnp.exp(-h1), approx=True)      # SiLU: exp/recip on EUP
    o_ref[...] = (gate * h2).astype(o_ref.dtype)


def _linear_scale_residual_kernel(x_ref, w_ref, b_ref, lam_ref, res_ref, o_ref):
    # Fused epilogue: y = residual + lambda * (x @ W + b);  lambda kept in f32.
    acc = jnp.dot(x_ref[...], w_ref[...], preferred_element_type=jnp.float32)
    acc = acc + b_ref[...].astype(jnp.float32)
    out = res_ref[...].astype(jnp.float32) + lam_ref[...] * acc
    o_ref[...] = out.astype(o_ref.dtype)


# --------------------------------------------------------------------------------------
# Wrappers
# --------------------------------------------------------------------------------------

def ln_qkv(x2d, gamma, beta, wqkv, bqkv, *, eps, out_dtype, tile_rows=1024):
    rows, din = x2d.shape
    d3 = wqkv.shape[1]
    dout = d3 // 3
    per_row = din * x2d.dtype.itemsize + d3 * jnp.dtype(out_dtype).itemsize
    resident = wqkv.size * wqkv.dtype.itemsize + (2 * din + d3) * 4
    tile = _row_tile(rows, per_row, resident, tile_rows)
    out_sds = jax.ShapeDtypeStruct((rows, dout), out_dtype)
    row_out = pl.BlockSpec((tile, dout), lambda i: (i, 0))
    return pl.pallas_call(
        functools.partial(_ln_qkv_kernel, eps=eps, dout=dout),
        out_shape=(out_sds, out_sds, out_sds),
        grid_spec=pltpu.PrefetchScalarGridSpec(
            num_scalar_prefetch=0,
            grid=(pl.cdiv(rows, tile),),
            in_specs=[
                pl.BlockSpec((tile, din), lambda i: (i, 0)),
                pl.BlockSpec((1, din), lambda i: (0, 0)),
                pl.BlockSpec((1, din), lambda i: (0, 0)),
                pl.BlockSpec((din, d3), lambda i: (0, 0)),   # constant index: DMA'd once
                pl.BlockSpec((1, d3), lambda i: (0, 0)),
            ],
            out_specs=(row_out, row_out, row_out),
        ),
        compiler_params=_cparams(1),
    )(x2d,
      gamma.reshape(1, din).astype(jnp.float32),
      beta.reshape(1, din).astype(jnp.float32),
      wqkv,
      bqkv.reshape(1, d3).astype(jnp.float32))


def attention(q, k, v, *, heads):
    B, S, D = q.shape
    dh = D // heads
    tq = S if S <= 1024 else 512
    q_blk = pl.BlockSpec((1, tq, D), lambda b, qi: (b, qi, 0))
    kv_blk = pl.BlockSpec((1, S, D), lambda b, qi: (b, 0, 0))   # constant along qi: no re-DMA
    return pl.pallas_call(
        functools.partial(_attention_kernel, heads=heads, scale=1.0 / math.sqrt(dh)),
        out_shape=jax.ShapeDtypeStruct((B, S, D), q.dtype),
        grid_spec=pltpu.PrefetchScalarGridSpec(
            num_scalar_prefetch=0,
            grid=(B, pl.cdiv(S, tq)),
            in_specs=[q_blk, kv_blk, kv_blk],
            out_specs=q_blk,
        ),
        compiler_params=_cparams(2),
    )(q, k, v)


def ln_swiglu(x2d, gamma, beta, w1, b1, w2, b2, *, eps, out_dtype, tile_rows=1024):
    rows, din = x2d.shape
    hid = w1.shape[1]
    per_row = din * x2d.dtype.itemsize + hid * jnp.dtype(out_dtype).itemsize
    resident = (w1.size * w1.dtype.itemsize + w2.size * w2.dtype.itemsize
                + (2 * din + 2 * hid) * 4)
    tile = _row_tile(rows, per_row, resident, tile_rows)
    return pl.pallas_call(
        functools.partial(_ln_swiglu_kernel, eps=eps),
        out_shape=jax.ShapeDtypeStruct((rows, hid), out_dtype),
        grid_spec=pltpu.PrefetchScalarGridSpec(
            num_scalar_prefetch=0,
            grid=(pl.cdiv(rows, tile),),
            in_specs=[
                pl.BlockSpec((tile, din), lambda i: (i, 0)),
                pl.BlockSpec((1, din), lambda i: (0, 0)),
                pl.BlockSpec((1, din), lambda i: (0, 0)),
                pl.BlockSpec((din, hid), lambda i: (0, 0)),
                pl.BlockSpec((1, hid), lambda i: (0, 0)),
                pl.BlockSpec((din, hid), lambda i: (0, 0)),
                pl.BlockSpec((1, hid), lambda i: (0, 0)),
            ],
            out_specs=pl.BlockSpec((tile, hid), lambda i: (i, 0)),
        ),
        compiler_params=_cparams(1),
    )(x2d,
      gamma.reshape(1, din).astype(jnp.float32),
      beta.reshape(1, din).astype(jnp.float32),
      w1, b1.reshape(1, hid).astype(jnp.float32),
      w2, b2.reshape(1, hid).astype(jnp.float32))


def linear_scale_residual(x2d, w, b, lam, res2d, *, tile_rows=1024):
    # y = res + lam * (x @ w + b) — LayerScale + residual fused into the matmul epilogue.
    rows, din = x2d.shape
    dout = w.shape[1]
    out_dtype = res2d.dtype
    per_row = din * x2d.dtype.itemsize + dout * 2 * res2d.dtype.itemsize
    resident = w.size * w.dtype.itemsize + 2 * dout * 4
    tile = _row_tile(rows, per_row, resident, tile_rows)
    return pl.pallas_call(
        _linear_scale_residual_kernel,
        out_shape=jax.ShapeDtypeStruct((rows, dout), out_dtype),
        grid_spec=pltpu.PrefetchScalarGridSpec(
            num_scalar_prefetch=0,
            grid=(pl.cdiv(rows, tile),),
            in_specs=[
                pl.BlockSpec((tile, din), lambda i: (i, 0)),
                pl.BlockSpec((din, dout), lambda i: (0, 0)),
                pl.BlockSpec((1, dout), lambda i: (0, 0)),
                pl.BlockSpec((1, dout), lambda i: (0, 0)),
                pl.BlockSpec((tile, dout), lambda i: (i, 0)),
            ],
            out_specs=pl.BlockSpec((tile, dout), lambda i: (i, 0)),
        ),
        compiler_params=_cparams(1),
    )(x2d, w,
      b.reshape(1, dout).astype(jnp.float32),
      lam.reshape(1, dout).astype(jnp.float32),    # lambda stays f32
      res2d)


# --------------------------------------------------------------------------------------
# Full Dino2Block forward
# --------------------------------------------------------------------------------------

def dino2_block(x, params, *, heads, eps=1e-6, compute_dtype=jnp.bfloat16, tile_rows=1024):
    """x: (B, S, D). Params follow PyTorch Linear layout: weight (out, in), bias (out,)."""
    B, S, D = x.shape
    rows = B * S
    x2d = x.reshape(rows, D)
    cd = compute_dtype

    # --- attention branch: x = x + lambda1 * Wo(attn(norm1(x))) ---
    wqkv = jnp.concatenate(
        [params["wq"].T, params["wk"].T, params["wv"].T], axis=1).astype(cd)
    bqkv = jnp.concatenate([params["bq"], params["bk"], params["bv"]])
    q, k, v = ln_qkv(x2d, params["norm1_g"], params["norm1_b"], wqkv, bqkv,
                     eps=eps, out_dtype=cd, tile_rows=tile_rows)
    attn = attention(q.reshape(B, S, D), k.reshape(B, S, D), v.reshape(B, S, D),
                     heads=heads)
    x2d = linear_scale_residual(attn.reshape(rows, D), params["wo"].T.astype(cd),
                                params["bo"], params["lambda1"], x2d,
                                tile_rows=tile_rows)

    # --- MLP branch: x = x + lambda2 * W_out(SwiGLU(W_in(norm2(x)))) ---
    hidden = params["w_in"].shape[0] // 2
    w1 = params["w_in"][:hidden].T.astype(cd)
    w2 = params["w_in"][hidden:].T.astype(cd)
    g = ln_swiglu(x2d, params["norm2_g"], params["norm2_b"],
                  w1, params["b_in"][:hidden], w2, params["b_in"][hidden:],
                  eps=eps, out_dtype=cd, tile_rows=tile_rows)
    x2d = linear_scale_residual(g, params["w_out"].T.astype(cd), params["b_out"],
                                params["lambda2"], x2d, tile_rows=tile_rows)

    return x2d.reshape(B, S, D)


# --------------------------------------------------------------------------------------
# Pure-JAX reference (mirrors the PyTorch module)
# --------------------------------------------------------------------------------------

def dino2_block_ref(x, params, *, heads, eps=1e-6):
    B, S, D = x.shape
    dh = D // heads
    hp = jax.lax.Precision.HIGHEST

    def ln(t, g, b):
        t = t.astype(jnp.float32)
        mu = t.mean(-1, keepdims=True)
        var = ((t - mu) ** 2).mean(-1, keepdims=True)
        return (t - mu) * jax.lax.rsqrt(var + eps) * g + b

    def lin(t, w, b):
        return jnp.dot(t, w.T, precision=hp) + b

    h = ln(x, params["norm1_g"], params["norm1_b"])
    q = lin(h, params["wq"], params["bq"])
    k = lin(h, params["wk"], params["bk"])
    v = lin(h, params["wv"], params["bv"])

    def split(t):
        return t.reshape(B, S, heads, dh).transpose(0, 2, 1, 3)

    qh, kh, vh = split(q), split(k), split(v)
    s = jnp.einsum("bhqd,bhkd->bhqk", qh, kh, precision=hp) / math.sqrt(dh)
    p = jax.nn.softmax(s, axis=-1)
    a = jnp.einsum("bhqk,bhkd->bhqd", p, vh, precision=hp)
    a = a.transpose(0, 2, 1, 3).reshape(B, S, D)
    x = x + params["lambda1"] * lin(a, params["wo"], params["bo"])

    h2 = ln(x, params["norm2_g"], params["norm2_b"])
    pre = lin(h2, params["w_in"], params["b_in"])
    hidden = params["w_in"].shape[0] // 2
    x1, x2 = pre[..., :hidden], pre[..., hidden:]
    g = jax.nn.silu(x1) * x2
    x = x + params["lambda2"] * lin(g, params["w_out"], params["b_out"])
    return x


# --------------------------------------------------------------------------------------
# Demo / correctness check
# --------------------------------------------------------------------------------------

if __name__ == "__main__":
    B, S, D, heads = 2, 8, 32, 2
    eps = 1e-6
    hidden = (int(int(D * 4) * 2 / 3) + 7) // 8 * 8   # SwiGLUFFN hidden_features rule

    key = jax.random.PRNGKey(0)
    keys = jax.random.split(key, 20)

    def wmat(k, out_f, in_f):
        return jax.random.normal(k, (out_f, in_f), jnp.float32) / math.sqrt(in_f)

    def bvec(k, n):
        return 0.02 * jax.random.normal(k, (n,), jnp.float32)

    params = dict(
        norm1_g=1.0 + 0.1 * jax.random.normal(keys[0], (D,), jnp.float32),
        norm1_b=bvec(keys[1], D),
        wq=wmat(keys[2], D, D), bq=bvec(keys[3], D),
        wk=wmat(keys[4], D, D), bk=bvec(keys[5], D),
        wv=wmat(keys[6], D, D), bv=bvec(keys[7], D),
        wo=wmat(keys[8], D, D), bo=bvec(keys[9], D),
        lambda1=0.1 * jax.random.normal(keys[10], (D,), jnp.float32),
        norm2_g=1.0 + 0.1 * jax.random.normal(keys[11], (D,), jnp.float32),
        norm2_b=bvec(keys[12], D),
        w_in=wmat(keys[13], 2 * hidden, D), b_in=bvec(keys[14], 2 * hidden),
        w_out=wmat(keys[15], D, hidden), b_out=bvec(keys[16], D),
        lambda2=0.1 * jax.random.normal(keys[17], (D,), jnp.float32),
    )
    x = jax.random.normal(keys[18], (B, S, D), jnp.float32)

    fwd = jax.jit(functools.partial(dino2_block, heads=heads, eps=eps))
    y = fwd(x, params)
    jax.block_until_ready(y)

    y_ref = dino2_block_ref(x, params, heads=heads, eps=eps)
    assert y.shape == x.shape
    # bf16 matmul operands (f32 accumulation) + approx reciprocals -> slightly looser tolerance.
    assert jnp.allclose(y, y_ref, atol=3e-2, rtol=3e-2), float(jnp.max(jnp.abs(y - y_ref)))

    print("KERNEL_OK")
</pallas_src>

<mosaic_0001>
module attributes {stable_mosaic.version = 11 : i64} {
  func.func @_ln_qkv_kernel(%arg0: i32, %arg1: memref<16x32xf32, #tpu.memory_space<vmem>>, %arg2: memref<1x32xf32, #tpu.memory_space<vmem>>, %arg3: memref<1x32xf32, #tpu.memory_space<vmem>>, %arg4: memref<32x96xbf16, #tpu.memory_space<vmem>>, %arg5: memref<1x96xf32, #tpu.memory_space<vmem>>, %arg6: memref<16x32xbf16, #tpu.memory_space<vmem>>, %arg7: memref<16x32xbf16, #tpu.memory_space<vmem>>, %arg8: memref<16x32xbf16, #tpu.memory_space<vmem>>) attributes {dimension_semantics = [#tpu.dimension_semantics<parallel>], iteration_bounds = array<i64: 1>, scalar_prefetch = 0 : i64, scratch_operands = 0 : i64, tpu.core_type = #tpu.core_type<tc>, window_params = [{transform_indices = @transform_0, window_bounds = array<i64: 16, 32>}, {pipeline_mode = #tpu.pipeline_mode<synchronous>, transform_indices = @transform_1, window_bounds = array<i64: 1, 32>}, {pipeline_mode = #tpu.pipeline_mode<synchronous>, transform_indices = @transform_2, window_bounds = array<i64: 1, 32>}, {pipeline_mode = #tpu.pipeline_mode<synchronous>, transform_indices = @transform_3, window_bounds = array<i64: 32, 96>}, {pipeline_mode = #tpu.pipeline_mode<synchronous>, transform_indices = @transform_4, window_bounds = array<i64: 1, 96>}, {transform_indices = @transform_5, window_bounds = array<i64: 16, 32>}, {transform_indices = @transform_6, window_bounds = array<i64: 16, 32>}, {transform_indices = @transform_7, window_bounds = array<i64: 16, 32>}]} {
    %c0 = arith.constant 0 : index
    %c0_0 = arith.constant 0 : index
    %0 = vector.load %arg1[%c0, %c0_0] : memref<16x32xf32, #tpu.memory_space<vmem>>, vector<16x32xf32>
    %cst = arith.constant dense<0.000000e+00> : vector<16xf32>
    %1 = vector.multi_reduction <add>, %0, %cst [1] : vector<16x32xf32> to vector<16xf32>
    %2 = vector.shape_cast %1 : vector<16xf32> to vector<16x1xf32>
    %cst_1 = arith.constant 3.200000e+01 : f32
    %3 = vector.broadcast %cst_1 : f32 to vector<16x1xf32>
    %4 = arith.divf %2, %3 : vector<16x1xf32>
    %5 = vector.broadcast %4 : vector<16x1xf32> to vector<16x32xf32>
    %6 = arith.subf %0, %5 : vector<16x32xf32>
    %7 = arith.mulf %6, %6 : vector<16x32xf32>
    %cst_2 = arith.constant dense<0.000000e+00> : vector<16xf32>
    %8 = vector.multi_reduction <add>, %7, %cst_2 [1] : vector<16x32xf32> to vector<16xf32>
    %9 = vector.shape_cast %8 : vector<16xf32> to vector<16x1xf32>
    %cst_3 = arith.constant 3.200000e+01 : f32
    %10 = vector.broadcast %cst_3 : f32 to vector<16x1xf32>
    %11 = arith.divf %9, %10 : vector<16x1xf32>
    %cst_4 = arith.constant 9.99999997E-7 : f32
    %12 = vector.broadcast %cst_4 : f32 to vector<16x1xf32>
    %13 = arith.addf %11, %12 : vector<16x1xf32>
    %14 = math.rsqrt %13 : vector<16x1xf32>
    %15 = vector.broadcast %14 : vector<16x1xf32> to vector<16x32xf32>
    %16 = arith.mulf %6, %15 : vector<16x32xf32>
    %c0_5 = arith.constant 0 : index
    %c0_6 = arith.constant 0 : index
    %17 = vector.load %arg2[%c0_5, %c0_6] : memref<1x32xf32, #tpu.memory_space<vmem>>, vector<1x32xf32>
    %18 = vector.broadcast %17 : vector<1x32xf32> to vector<16x32xf32>
    %19 = arith.mulf %16, %18 : vector<16x32xf32>
    %c0_7 = arith.constant 0 : index
    %c0_8 = arith.constant 0 : index
    %20 = vector.load %arg3[%c0_7, %c0_8] : memref<1x32xf32, #tpu.memory_space<vmem>>, vector<1x32xf32>
    %21 = vector.broadcast %20 : vector<1x32xf32> to vector<16x32xf32>
    %22 = arith.addf %19, %21 : vector<16x32xf32>
    %23 = arith.truncf %22 : vector<16x32xf32> to vector<16x32xbf16>
    %c0_9 = arith.constant 0 : index
    %c0_10 = arith.constant 0 : index
    %24 = vector.load %arg4[%c0_9, %c0_10] : memref<32x96xbf16, #tpu.memory_space<vmem>>, vector<32x96xbf16>
    %cst_11 = arith.constant dense<0.000000e+00> : vector<16x96xf32>
    %25 = tpu.matmul %23, %24, %cst_11 {dimension_numbers = #tpu.dot_dimension_numbers<[1], [0], [0], [1], [0, 0, 1, 1], [], []>} : vector<16x32xbf16>, vector<32x96xbf16>, vector<16x96xf32> -> vector<16x96xf32>
    %c0_12 = arith.constant 0 : index
    %c0_13 = arith.constant 0 : index
    %26 = vector.load %arg5[%c0_12, %c0_13] : memref<1x96xf32, #tpu.memory_space<vmem>>, vector<1x96xf32>
    %27 = vector.broadcast %26 : vector<1x96xf32> to vector<16x96xf32>
    %28 = arith.addf %25, %27 : vector<16x96xf32>
    %29 = vector.extract_strided_slice %28 {offsets = [0, 0], sizes = [16, 32], strides = [1, 1]} : vector<16x96xf32> to vector<16x32xf32>
    %30 = arith.truncf %29 : vector<16x32xf32> to vector<16x32xbf16>
    %c0_14 = arith.constant 0 : index
    %c0_15 = arith.constant 0 : index
    %31 = vector.load %arg6[%c0_14, %c0_15] : memref<16x32xbf16, #tpu.memory_space<vmem>>, vector<16x32xbf16>
    tpu.vector_store %arg6[%c0_14, %c0_15], %30 {strides = array<i32>} : memref<16x32xbf16, #tpu.memory_space<vmem>>, vector<16x32xbf16>,
    %32 = vector.extract_strided_slice %28 {offsets = [0, 32], sizes = [16, 32], strides = [1, 1]} : vector<16x96xf32> to vector<16x32xf32>
    %33 = arith.truncf %32 : vector<16x32xf32> to vector<16x32xbf16>
    %c0_16 = arith.constant 0 : index
    %c0_17 = arith.constant 0 : index
    %34 = vector.load %arg7[%c0_16, %c0_17] : memref<16x32xbf16, #tpu.memory_space<vmem>>, vector<16x32xbf16>
    tpu.vector_store %arg7[%c0_16, %c0_17], %33 {strides = array<i32>} : memref<16x32xbf16, #tpu.memory_space<vmem>>, vector<16x32xbf16>,
    %35 = vector.extract_strided_slice %28 {offsets = [0, 64], sizes = [16, 32], strides = [1, 1]} : vector<16x96xf32> to vector<16x32xf32>
    %36 = arith.truncf %35 : vector<16x32xf32> to vector<16x32xbf16>
    %c0_18 = arith.constant 0 : index
    %c0_19 = arith.constant 0 : index
    %37 = vector.load %arg8[%c0_18, %c0_19] : memref<16x32xbf16, #tpu.memory_space<vmem>>, vector<16x32xbf16>
    tpu.vector_store %arg8[%c0_18, %c0_19], %36 {strides = array<i32>} : memref<16x32xbf16, #tpu.memory_space<vmem>>, vector<16x32xbf16>,
    return
  }
  func.func @transform_0(%arg0: i32) -> (i32, i32) {
    %c0_i32 = arith.constant 0 : i32
    %c0_i32_0 = arith.constant 0 : i32
    return %arg0, %c0_i32 : i32, i32
  }
  func.func @transform_1(%arg0: i32) -> (i32, i32) {
    %c0_i32 = arith.constant 0 : i32
    %c0_i32_0 = arith.constant 0 : i32
    %c0_i32_1 = arith.constant 0 : i32
    return %c0_i32, %c0_i32_0 : i32, i32
  }
  func.func @transform_2(%arg0: i32) -> (i32, i32) {
    %c0_i32 = arith.constant 0 : i32
    %c0_i32_0 = arith.constant 0 : i32
    %c0_i32_1 = arith.constant 0 : i32
    return %c0_i32, %c0_i32_0 : i32, i32
  }
  func.func @transform_3(%arg0: i32) -> (i32, i32) {
    %c0_i32 = arith.constant 0 : i32
    %c0_i32_0 = arith.constant 0 : i32
    %c0_i32_1 = arith.constant 0 : i32
    return %c0_i32, %c0_i32_0 : i32, i32
  }
  func.func @transform_4(%arg0: i32) -> (i32, i32) {
    %c0_i32 = arith.constant 0 : i32
    %c0_i32_0 = arith.constant 0 : i32
    %c0_i32_1 = arith.constant 0 : i32
    return %c0_i32, %c0_i32_0 : i32, i32
  }
  func.func @transform_5(%arg0: i32) -> (i32, i32) {
    %c0_i32 = arith.constant 0 : i32
    %c0_i32_0 = arith.constant 0 : i32
    return %arg0, %c0_i32 : i32, i32
  }
  func.func @transform_6(%arg0: i32) -> (i32, i32) {
    %c0_i32 = arith.constant 0 : i32
    %c0_i32_0 = arith.constant 0 : i32
    return %arg0, %c0_i32 : i32, i32
  }
  func.func @transform_7(%arg0: i32) -> (i32, i32) {
    %c0_i32 = arith.constant 0 : i32
    %c0_i32_0 = arith.constant 0 : i32
    return %arg0, %c0_i32 : i32, i32
  }
}

module attributes {stable_mosaic.version = 11 : i64} {
  func.func @_attention_kernel(%arg0: i32, %arg1: i32, %arg2: memref<1x8x32xbf16, #tpu.memory_space<vmem>>, %arg3: memref<1x8x32xbf16, #tpu.memory_space<vmem>>, %arg4: memref<1x8x32xbf16, #tpu.memory_space<vmem>>, %arg5: memref<1x8x32xbf16, #tpu.memory_space<vmem>>) attributes {dimension_semantics = [#tpu.dimension_semantics<parallel>, #tpu.dimension_semantics<parallel>], iteration_bounds = array<i64: 2, 1>, scalar_prefetch = 0 : i64, scratch_operands = 0 : i64, tpu.core_type = #tpu.core_type<tc>, window_params = [{transform_indices = @transform_0, window_bounds = array<i64: 1, 8, 32>}, {transform_indices = @transform_1, window_bounds = array<i64: 1, 8, 32>}, {transform_indices = @transform_2, window_bounds = array<i64: 1, 8, 32>}, {transform_indices = @transform_3, window_bounds = array<i64: 1, 8, 32>}]} {
    %c0 = arith.constant 0 : index
    %c0_0 = arith.constant 0 : index
    %c0_1 = arith.constant 0 : index
    %0 = vector.load %arg2[%c0, %c0_0, %c0_1] : memref<1x8x32xbf16, #tpu.memory_space<vmem>>, vector<1x8x32xbf16>
    %1 = vector.shape_cast %0 : vector<1x8x32xbf16> to vector<8x32xbf16>
    %c0_2 = arith.constant 0 : index
    %c0_3 = arith.constant 0 : index
    %c0_4 = arith.constant 0 : index
    %2 = vector.load %arg3[%c0_2, %c0_3, %c0_4] : memref<1x8x32xbf16, #tpu.memory_space<vmem>>, vector<1x8x32xbf16>
    %3 = vector.shape_cast %2 : vector<1x8x32xbf16> to vector<8x32xbf16>
    %c0_5 = arith.constant 0 : index
    %c0_6 = arith.constant 0 : index
    %c0_7 = arith.constant 0 : index
    %4 = vector.load %arg4[%c0_5, %c0_6, %c0_7] : memref<1x8x32xbf16, #tpu.memory_space<vmem>>, vector<1x8x32xbf16>
    %5 = vector.shape_cast %4 : vector<1x8x32xbf16> to vector<8x32xbf16>
    %6 = vector.extract_strided_slice %1 {offsets = [0, 0], sizes = [8, 16], strides = [1, 1]} : vector<8x32xbf16> to vector<8x16xbf16>
    %7 = vector.extract_strided_slice %3 {offsets = [0, 0], sizes = [8, 16], strides = [1, 1]} : vector<8x32xbf16> to vector<8x16xbf16>
    %cst = arith.constant dense<0.000000e+00> : vector<8x8xf32>
    %8 = tpu.matmul %6, %7, %cst {dimension_numbers = #tpu.dot_dimension_numbers<[1], [1], [0], [0], [0, 0, 1, 0], [], []>} : vector<8x16xbf16>, vector<8x16xbf16>, vector<8x8xf32> -> vector<8x8xf32>
    %cst_8 = arith.constant 2.500000e-01 : f32
    %9 = vector.broadcast %cst_8 : f32 to vector<8x8xf32>
    %10 = arith.mulf %8, %9 : vector<8x8xf32>
    %cst_9 = arith.constant dense<0xFF800000> : vector<8xf32>
    %11 = vector.multi_reduction <maximumf>, %10, %cst_9 [1] : vector<8x8xf32> to vector<8xf32>
    %12 = vector.shape_cast %11 : vector<8xf32> to vector<8x1xf32>
    %13 = vector.broadcast %12 : vector<8x1xf32> to vector<8x8xf32>
    %14 = arith.subf %10, %13 : vector<8x8xf32>
    %15 = math.exp %14 : vector<8x8xf32>
    %cst_10 = arith.constant dense<0.000000e+00> : vector<8xf32>
    %16 = vector.multi_reduction <add>, %15, %cst_10 [1] : vector<8x8xf32> to vector<8xf32>
    %17 = vector.shape_cast %16 : vector<8xf32> to vector<8x1xf32>
    %18 = tpu.reciprocal %17 {approx = true} : vector<8x1xf32> -> vector<8x1xf32>
    %19 = arith.truncf %15 : vector<8x8xf32> to vector<8x8xbf16>
    %20 = vector.extract_strided_slice %5 {offsets = [0, 0], sizes = [8, 16], strides = [1, 1]} : vector<8x32xbf16> to vector<8x16xbf16>
    %cst_11 = arith.constant dense<0.000000e+00> : vector<8x16xf32>
    %21 = tpu.matmul %19, %20, %cst_11 {dimension_numbers = #tpu.dot_dimension_numbers<[1], [0], [0], [1], [0, 0, 1, 1], [], []>} : vector<8x8xbf16>, vector<8x16xbf16>, vector<8x16xf32> -> vector<8x16xf32>
    %22 = vector.broadcast %18 : vector<8x1xf32> to vector<8x16xf32>
    %23 = arith.mulf %21, %22 : vector<8x16xf32>
    %24 = vector.extract_strided_slice %1 {offsets = [0, 16], sizes = [8, 16], strides = [1, 1]} : vector<8x32xbf16> to vector<8x16xbf16>
    %25 = vector.extract_strided_slice %3 {offsets = [0, 16], sizes = [8, 16], strides = [1, 1]} : vector<8x32xbf16> to vector<8x16xbf16>
    %cst_12 = arith.constant dense<0.000000e+00> : vector<8x8xf32>
    %26 = tpu.matmul %24, %25, %cst_12 {dimension_numbers = #tpu.dot_dimension_numbers<[1], [1], [0], [0], [0, 0, 1, 0], [], []>} : vector<8x16xbf16>, vector<8x16xbf16>, vector<8x8xf32> -> vector<8x8xf32>
    %cst_13 = arith.constant 2.500000e-01 : f32
    %27 = vector.broadcast %cst_13 : f32 to vector<8x8xf32>
    %28 = arith.mulf %26, %27 : vector<8x8xf32>
    %cst_14 = arith.constant dense<0xFF800000> : vector<8xf32>
    %29 = vector.multi_reduction <maximumf>, %28, %cst_14 [1] : vector<8x8xf32> to vector<8xf32>
    %30 = vector.shape_cast %29 : vector<8xf32> to vector<8x1xf32>
    %31 = vector.broadcast %30 : vector<8x1xf32> to vector<8x8xf32>
    %32 = arith.subf %28, %31 : vector<8x8xf32>
    %33 = math.exp %32 : vector<8x8xf32>
    %cst_15 = arith.constant dense<0.000000e+00> : vector<8xf32>
    %34 = vector.multi_reduction <add>, %33, %cst_15 [1] : vector<8x8xf32> to vector<8xf32>
    %35 = vector.shape_cast %34 : vector<8xf32> to vector<8x1xf32>
    %36 = tpu.reciprocal %35 {approx = true} : vector<8x1xf32> -> vector<8x1xf32>
    %37 = arith.truncf %33 : vector<8x8xf32> to vector<8x8xbf16>
    %38 = vector.extract_strided_slice %5 {offsets = [0, 16], sizes = [8, 16], strides = [1, 1]} : vector<8x32xbf16> to vector<8x16xbf16>
    %cst_16 = arith.constant dense<0.000000e+00> : vector<8x16xf32>
    %39 = tpu.matmul %37, %38, %cst_16 {dimension_numbers = #tpu.dot_dimension_numbers<[1], [0], [0], [1], [0, 0, 1, 1], [], []>} : vector<8x8xbf16>, vector<8x16xbf16>, vector<8x16xf32> -> vector<8x16xf32>
    %40 = vector.broadcast %36 : vector<8x1xf32> to vector<8x16xf32>
    %41 = arith.mulf %39, %40 : vector<8x16xf32>
    %42 = tpu.concatenate %23, %41 in 1 : vector<8x16xf32>, vector<8x16xf32> -> vector<8x32xf32>
    %43 = arith.truncf %42 : vector<8x32xf32> to vector<8x32xbf16>
    %c0_17 = arith.constant 0 : index
    %c0_18 = arith.constant 0 : index
    %c0_19 = arith.constant 0 : index
    %44 = vector.load %arg5[%c0_17, %c0_18, %c0_19] : memref<1x8x32xbf16, #tpu.memory_space<vmem>>, vector<1x8x32xbf16>
    %45 = vector.shape_cast %44 : vector<1x8x32xbf16> to vector<8x32xbf16>
    %46 = vector.shape_cast %43 : vector<8x32xbf16> to vector<1x8x32xbf16>
    tpu.vector_store %arg5[%c0_17, %c0_18, %c0_19], %46 {strides = array<i32>} : memref<1x8x32xbf16, #tpu.memory_space<vmem>>, vector<1x8x32xbf16>,
    return
  }
  func.func @transform_0(%arg0: i32, %arg1: i32) -> (i32, i32, i32) {
    %c0_i32 = arith.constant 0 : i32
    %c0_i32_0 = arith.constant 0 : i32
    return %arg0, %arg1, %c0_i32 : i32, i32, i32
  }
  func.func @transform_1(%arg0: i32, %arg1: i32) -> (i32, i32, i32) {
    %c0_i32 = arith.constant 0 : i32
    %c0_i32_0 = arith.constant 0 : i32
    %c0_i32_1 = arith.constant 0 : i32
    return %arg0, %c0_i32, %c0_i32_0 : i32, i32, i32
  }
  func.func @transform_2(%arg0: i32, %arg1: i32) -> (i32, i32, i32) {
    %c0_i32 = arith.constant 0 : i32
    %c0_i32_0 = arith.constant 0 : i32
    %c0_i32_1 = arith.constant 0 : i32
    return %arg0, %c0_i32, %c0_i32_0 : i32, i32, i32
  }
  func.func @transform_3(%arg0: i32, %arg1: i32) -> (i32, i32, i32) {
    %c0_i32 = arith.constant 0 : i32
    %c0_i32_0 = arith.constant 0 : i32
    return %arg0, %arg1, %c0_i32 : i32, i32, i32
  }
}

module attributes {stable_mosaic.version = 11 : i64} {
  func.func @_linear_scale_residual_kernel(%arg0: i32, %arg1: memref<16x32xbf16, #tpu.memory_space<vmem>>, %arg2: memref<32x32xbf16, #tpu.memory_space<vmem>>, %arg3: memref<1x32xf32, #tpu.memory_space<vmem>>, %arg4: memref<1x32xf32, #tpu.memory_space<vmem>>, %arg5: memref<16x32xf32, #tpu.memory_space<vmem>>, %arg6: memref<16x32xf32, #tpu.memory_space<vmem>>) attributes {dimension_semantics = [#tpu.dimension_semantics<parallel>], iteration_bounds = array<i64: 1>, scalar_prefetch = 0 : i64, scratch_operands = 0 : i64, tpu.core_type = #tpu.core_type<tc>, window_params = [{transform_indices = @transform_0, window_bounds = array<i64: 16, 32>}, {pipeline_mode = #tpu.pipeline_mode<synchronous>, transform_indices = @transform_1, window_bounds = array<i64: 32, 32>}, {pipeline_mode = #tpu.pipeline_mode<synchronous>, transform_indices = @transform_2, window_bounds = array<i64: 1, 32>}, {pipeline_mode = #tpu.pipeline_mode<synchronous>, transform_indices = @transform_3, window_bounds = array<i64: 1, 32>}, {transform_indices = @transform_4, window_bounds = array<i64: 16, 32>}, {transform_indices = @transform_5, window_bounds = array<i64: 16, 32>}]} {
    %c0 = arith.constant 0 : index
    %c0_0 = arith.constant 0 : index
    %0 = vector.load %arg1[%c0, %c0_0] : memref<16x32xbf16, #tpu.memory_space<vmem>>, vector<16x32xbf16>
    %c0_1 = arith.constant 0 : index
    %c0_2 = arith.constant 0 : index
    %1 = vector.load %arg2[%c0_1, %c0_2] : memref<32x32xbf16, #tpu.memory_space<vmem>>, vector<32x32xbf16>
    %cst = arith.constant dense<0.000000e+00> : vector<16x32xf32>
    %2 = tpu.matmul %0, %1, %cst {dimension_numbers = #tpu.dot_dimension_numbers<[1], [0], [0], [1], [0, 0, 1, 1], [], []>} : vector<16x32xbf16>, vector<32x32xbf16>, vector<16x32xf32> -> vector<16x32xf32>
    %c0_3 = arith.constant 0 : index
    %c0_4 = arith.constant 0 : index
    %3 = vector.load %arg3[%c0_3, %c0_4] : memref<1x32xf32, #tpu.memory_space<vmem>>, vector<1x32xf32>
    %4 = vector.broadcast %3 : vector<1x32xf32> to vector<16x32xf32>
    %5 = arith.addf %2, %4 : vector<16x32xf32>
    %c0_5 = arith.constant 0 : index
    %c0_6 = arith.constant 0 : index
    %6 = vector.load %arg5[%c0_5, %c0_6] : memref<16x32xf32, #tpu.memory_space<vmem>>, vector<16x32xf32>
    %c0_7 = arith.constant 0 : index
    %c0_8 = arith.constant 0 : index
    %7 = vector.load %arg4[%c0_7, %c0_8] : memref<1x32xf32, #tpu.memory_space<vmem>>, vector<1x32xf32>
    %8 = vector.broadcast %7 : vector<1x32xf32> to vector<16x32xf32>
    %9 = arith.mulf %8, %5 : vector<16x32xf32>
    %10 = arith.addf %6, %9 : vector<16x32xf32>
    %c0_9 = arith.constant 0 : index
    %c0_10 = arith.constant 0 : index
    %11 = vector.load %arg6[%c0_9, %c0_10] : memref<16x32xf32, #tpu.memory_space<vmem>>, vector<16x32xf32>
    tpu.vector_store %arg6[%c0_9, %c0_10], %10 {strides = array<i32>} : memref<16x32xf32, #tpu.memory_space<vmem>>, vector<16x32xf32>,
    return
  }
  func.func @transform_0(%arg0: i32) -> (i32, i32) {
    %c0_i32 = arith.constant 0 : i32
    %c0_i32_0 = arith.constant 0 : i32
    return %arg0, %c0_i32 : i32, i32
  }
  func.func @transform_1(%arg0: i32) -> (i32, i32) {
    %c0_i32 = arith.constant 0 : i32
    %c0_i32_0 = arith.constant 0 : i32
    %c0_i32_1 = arith.constant 0 : i32
    return %c0_i32, %c0_i32_0 : i32, i32
  }
  func.func @transform_2(%arg0: i32) -> (i32, i32) {
    %c0_i32 = arith.constant 0 : i32
    %c0_i32_0 = arith.constant 0 : i32
    %c0_i32_1 = arith.constant 0 : i32
    return %c0_i32, %c0_i32_0 : i32, i32
  }
  func.func @transform_3(%arg0: i32) -> (i32, i32) {
    %c0_i32 = arith.constant 0 : i32
    %c0_i32_0 = arith.constant 0 : i32
    %c0_i32_1 = arith.constant 0 : i32
    return %c0_i32, %c0_i32_0 : i32, i32
  }
  func.func @transform_4(%arg0: i32) -> (i32, i32) {
    %c0_i32 = arith.constant 0 : i32
    %c0_i32_0 = arith.constant 0 : i32
    return %arg0, %c0_i32 : i32, i32
  }
  func.func @transform_5(%arg0: i32) -> (i32, i32) {
    %c0_i32 = arith.constant 0 : i32
    %c0_i32_0 = arith.constant 0 : i32
    return %arg0, %c0_i32 : i32, i32
  }
}

module attributes {stable_mosaic.version = 11 : i64} {
  func.func @_ln_swiglu_kernel(%arg0: i32, %arg1: memref<16x32xf32, #tpu.memory_space<vmem>>, %arg2: memref<1x32xf32, #tpu.memory_space<vmem>>, %arg3: memref<1x32xf32, #tpu.memory_space<vmem>>, %arg4: memref<32x88xbf16, #tpu.memory_space<vmem>>, %arg5: memref<1x88xf32, #tpu.memory_space<vmem>>, %arg6: memref<32x88xbf16, #tpu.memory_space<vmem>>, %arg7: memref<1x88xf32, #tpu.memory_space<vmem>>, %arg8: memref<16x88xbf16, #tpu.memory_space<vmem>>) attributes {dimension_semantics = [#tpu.dimension_semantics<parallel>], iteration_bounds = array<i64: 1>, scalar_prefetch = 0 : i64, scratch_operands = 0 : i64, tpu.core_type = #tpu.core_type<tc>, window_params = [{transform_indices = @transform_0, window_bounds = array<i64: 16, 32>}, {pipeline_mode = #tpu.pipeline_mode<synchronous>, transform_indices = @transform_1, window_bounds = array<i64: 1, 32>}, {pipeline_mode = #tpu.pipeline_mode<synchronous>, transform_indices = @transform_2, window_bounds = array<i64: 1, 32>}, {pipeline_mode = #tpu.pipeline_mode<synchronous>, transform_indices = @transform_3, window_bounds = array<i64: 32, 88>}, {pipeline_mode = #tpu.pipeline_mode<synchronous>, transform_indices = @transform_4, window_bounds = array<i64: 1, 88>}, {pipeline_mode = #tpu.pipeline_mode<synchronous>, transform_indices = @transform_5, window_bounds = array<i64: 32, 88>}, {pipeline_mode = #tpu.pipeline_mode<synchronous>, transform_indices = @transform_6, window_bounds = array<i64: 1, 88>}, {transform_indices = @transform_7, window_bounds = array<i64: 16, 88>}]} {
    %c0 = arith.constant 0 : index
    %c0_0 = arith.constant 0 : index
    %0 = vector.load %arg1[%c0, %c0_0] : memref<16x32xf32, #tpu.memory_space<vmem>>, vector<16x32xf32>
    %cst = arith.constant dense<0.000000e+00> : vector<16xf32>
    %1 = vector.multi_reduction <add>, %0, %cst [1] : vector<16x32xf32> to vector<16xf32>
    %2 = vector.shape_cast %1 : vector<16xf32> to vector<16x1xf32>
    %cst_1 = arith.constant 3.200000e+01 : f32
    %3 = vector.broadcast %cst_1 : f32 to vector<16x1xf32>
    %4 = arith.divf %2, %3 : vector<16x1xf32>
    %5 = vector.broadcast %4 : vector<16x1xf32> to vector<16x32xf32>
    %6 = arith.subf %0, %5 : vector<16x32xf32>
    %7 = arith.mulf %6, %6 : vector<16x32xf32>
    %cst_2 = arith.constant dense<0.000000e+00> : vector<16xf32>
    %8 = vector.multi_reduction <add>, %7, %cst_2 [1] : vector<16x32xf32> to vector<16xf32>
    %9 = vector.shape_cast %8 : vector<16xf32> to vector<16x1xf32>
    %cst_3 = arith.constant 3.200000e+01 : f32
    %10 = vector.broadcast %cst_3 : f32 to vector<16x1xf32>
    %11 = arith.divf %9, %10 : vector<16x1xf32>
    %cst_4 = arith.constant 9.99999997E-7 : f32
    %12 = vector.broadcast %cst_4 : f32 to vector<16x1xf32>
    %13 = arith.addf %11, %12 : vector<16x1xf32>
    %14 = math.rsqrt %13 : vector<16x1xf32>
    %15 = vector.broadcast %14 : vector<16x1xf32> to vector<16x32xf32>
    %16 = arith.mulf %6, %15 : vector<16x32xf32>
    %c0_5 = arith.constant 0 : index
    %c0_6 = arith.constant 0 : index
    %17 = vector.load %arg2[%c0_5, %c0_6] : memref<1x32xf32, #tpu.memory_space<vmem>>, vector<1x32xf32>
    %18 = vector.broadcast %17 : vector<1x32xf32> to vector<16x32xf32>
    %19 = arith.mulf %16, %18 : vector<16x32xf32>
    %c0_7 = arith.constant 0 : index
    %c0_8 = arith.constant 0 : index
    %20 = vector.load %arg3[%c0_7, %c0_8] : memref<1x32xf32, #tpu.memory_space<vmem>>, vector<1x32xf32>
    %21 = vector.broadcast %20 : vector<1x32xf32> to vector<16x32xf32>
    %22 = arith.addf %19, %21 : vector<16x32xf32>
    %23 = arith.truncf %22 : vector<16x32xf32> to vector<16x32xbf16>
    %c0_9 = arith.constant 0 : index
    %c0_10 = arith.constant 0 : index
    %24 = vector.load %arg4[%c0_9, %c0_10] : memref<32x88xbf16, #tpu.memory_space<vmem>>, vector<32x88xbf16>
    %cst_11 = arith.constant dense<0.000000e+00> : vector<16x88xf32>
    %25 = tpu.matmul %23, %24, %cst_11 {dimension_numbers = #tpu.dot_dimension_numbers<[1], [0], [0], [1], [0, 0, 1, 1], [], []>} : vector<16x32xbf16>, vector<32x88xbf16>, vector<16x88xf32> -> vector<16x88xf32>
    %c0_12 = arith.constant 0 : index
    %c0_13 = arith.constant 0 : index
    %26 = vector.load %arg5[%c0_12, %c0_13] : memref<1x88xf32, #tpu.memory_space<vmem>>, vector<1x88xf32>
    %27 = vector.broadcast %26 : vector<1x88xf32> to vector<16x88xf32>
    %28 = arith.addf %25, %27 : vector<16x88xf32>
    %c0_14 = arith.constant 0 : index
    %c0_15 = arith.constant 0 : index
    %29 = vector.load %arg6[%c0_14, %c0_15] : memref<32x88xbf16, #tpu.memory_space<vmem>>, vector<32x88xbf16>
    %cst_16 = arith.constant dense<0.000000e+00> : vector<16x88xf32>
    %30 = tpu.matmul %23, %29, %cst_16 {dimension_numbers = #tpu.dot_dimension_numbers<[1], [0], [0], [1], [0, 0, 1, 1], [], []>} : vector<16x32xbf16>, vector<32x88xbf16>, vector<16x88xf32> -> vector<16x88xf32>
    %c0_17 = arith.constant 0 : index
    %c0_18 = arith.constant 0 : index
    %31 = vector.load %arg7[%c0_17, %c0_18] : memref<1x88xf32, #tpu.memory_space<vmem>>, vector<1x88xf32>
    %32 = vector.broadcast %31 : vector<1x88xf32> to vector<16x88xf32>
    %33 = arith.addf %30, %32 : vector<16x88xf32>
    %cst_19 = arith.constant 0.000000e+00 : f32
    %34 = vector.broadcast %cst_19 : f32 to vector<16x88xf32>
    %35 = arith.subf %34, %28 : vector<16x88xf32>
    %36 = math.exp %35 : vector<16x88xf32>
    %cst_20 = arith.constant 1.000000e+00 : f32
    %37 = vector.broadcast %cst_20 : f32 to vector<16x88xf32>
    %38 = arith.addf %37, %36 : vector<16x88xf32>
    %39 = tpu.reciprocal %38 {approx = true} : vector<16x88xf32> -> vector<16x88xf32>
    %40 = arith.mulf %28, %39 : vector<16x88xf32>
    %41 = arith.mulf %40, %33 : vector<16x88xf32>
    %42 = arith.truncf %41 : vector<16x88xf32> to vector<16x88xbf16>
    %c0_21 = arith.constant 0 : index
    %c0_22 = arith.constant 0 : index
    %43 = vector.load %arg8[%c0_21, %c0_22] : memref<16x88xbf16, #tpu.memory_space<vmem>>, vector<16x88xbf16>
    tpu.vector_store %arg8[%c0_21, %c0_22], %42 {strides = array<i32>} : memref<16x88xbf16, #tpu.memory_space<vmem>>, vector<16x88xbf16>,
    return
  }
  func.func @transform_0(%arg0: i32) -> (i32, i32) {
    %c0_i32 = arith.constant 0 : i32
    %c0_i32_0 = arith.constant 0 : i32
    return %arg0, %c0_i32 : i32, i32
  }
  func.func @transform_1(%arg0: i32) -> (i32, i32) {
    %c0_i32 = arith.constant 0 : i32
    %c0_i32_0 = arith.constant 0 : i32
    %c0_i32_1 = arith.constant 0 : i32
    return %c0_i32, %c0_i32_0 : i32, i32
  }
  func.func @transform_2(%arg0: i32) -> (i32, i32) {
    %c0_i32 = arith.constant 0 : i32
    %c0_i32_0 = arith.constant 0 : i32
    %c0_i32_1 = arith.constant 0 : i32
    return %c0_i32, %c0_i32_0 : i32, i32
  }
  func.func @transform_3(%arg0: i32) -> (i32, i32) {
    %c0_i32 = arith.constant 0 : i32
    %c0_i32_0 = arith.constant 0 : i32
    %c0_i32_1 = arith.constant 0 : i32
    return %c0_i32, %c0_i32_0 : i32, i32
  }
  func.func @transform_4(%arg0: i32) -> (i32, i32) {
    %c0_i32 = arith.constant 0 : i32
    %c0_i32_0 = arith.constant 0 : i32
    %c0_i32_1 = arith.constant 0 : i32
    return %c0_i32, %c0_i32_0 : i32, i32
  }
  func.func @transform_5(%arg0: i32) -> (i32, i32) {
    %c0_i32 = arith.constant 0 : i32
    %c0_i32_0 = arith.constant 0 : i32
    %c0_i32_1 = arith.constant 0 : i32
    return %c0_i32, %c0_i32_0 : i32, i32
  }
  func.func @transform_6(%arg0: i32) -> (i32, i32) {
    %c0_i32 = arith.constant 0 : i32
    %c0_i32_0 = arith.constant 0 : i32
    %c0_i32_1 = arith.constant 0 : i32
    return %c0_i32, %c0_i32_0 : i32, i32
  }
  func.func @transform_7(%arg0: i32) -> (i32, i32) {
    %c0_i32 = arith.constant 0 : i32
    %c0_i32_0 = arith.constant 0 : i32
    return %arg0, %c0_i32 : i32, i32
  }
}

module attributes {stable_mosaic.version = 11 : i64} {
  func.func @_linear_scale_residual_kernel(%arg0: i32, %arg1: memref<16x88xbf16, #tpu.memory_space<vmem>>, %arg2: memref<88x32xbf16, #tpu.memory_space<vmem>>, %arg3: memref<1x32xf32, #tpu.memory_space<vmem>>, %arg4: memref<1x32xf32, #tpu.memory_space<vmem>>, %arg5: memref<16x32xf32, #tpu.memory_space<vmem>>, %arg6: memref<16x32xf32, #tpu.memory_space<vmem>>) attributes {dimension_semantics = [#tpu.dimension_semantics<parallel>], iteration_bounds = array<i64: 1>, scalar_prefetch = 0 : i64, scratch_operands = 0 : i64, tpu.core_type = #tpu.core_type<tc>, window_params = [{transform_indices = @transform_0, window_bounds = array<i64: 16, 88>}, {pipeline_mode = #tpu.pipeline_mode<synchronous>, transform_indices = @transform_1, window_bounds = array<i64: 88, 32>}, {pipeline_mode = #tpu.pipeline_mode<synchronous>, transform_indices = @transform_2, window_bounds = array<i64: 1, 32>}, {pipeline_mode = #tpu.pipeline_mode<synchronous>, transform_indices = @transform_3, window_bounds = array<i64: 1, 32>}, {transform_indices = @transform_4, window_bounds = array<i64: 16, 32>}, {transform_indices = @transform_5, window_bounds = array<i64: 16, 32>}]} {
    %c0 = arith.constant 0 : index
    %c0_0 = arith.constant 0 : index
    %0 = vector.load %arg1[%c0, %c0_0] : memref<16x88xbf16, #tpu.memory_space<vmem>>, vector<16x88xbf16>
    %c0_1 = arith.constant 0 : index
    %c0_2 = arith.constant 0 : index
    %1 = vector.load %arg2[%c0_1, %c0_2] : memref<88x32xbf16, #tpu.memory_space<vmem>>, vector<88x32xbf16>
    %cst = arith.constant dense<0.000000e+00> : vector<16x32xf32>
    %2 = tpu.matmul %0, %1, %cst {dimension_numbers = #tpu.dot_dimension_numbers<[1], [0], [0], [1], [0, 0, 1, 1], [], []>} : vector<16x88xbf16>, vector<88x32xbf16>, vector<16x32xf32> -> vector<16x32xf32>
    %c0_3 = arith.constant 0 : index
    %c0_4 = arith.constant 0 : index
    %3 = vector.load %arg3[%c0_3, %c0_4] : memref<1x32xf32, #tpu.memory_space<vmem>>, vector<1x32xf32>
    %4 = vector.broadcast %3 : vector<1x32xf32> to vector<16x32xf32>
    %5 = arith.addf %2, %4 : vector<16x32xf32>
    %c0_5 = arith.constant 0 : index
    %c0_6 = arith.constant 0 : index
    %6 = vector.load %arg5[%c0_5, %c0_6] : memref<16x32xf32, #tpu.memory_space<vmem>>, vector<16x32xf32>
    %c0_7 = arith.constant 0 : index
    %c0_8 = arith.constant 0 : index
    %7 = vector.load %arg4[%c0_7, %c0_8] : memref<1x32xf32, #tpu.memory_space<vmem>>, vector<1x32xf32>
    %8 = vector.broadcast %7 : vector<1x32xf32> to vector<16x32xf32>
    %9 = arith.mulf %8, %5 : vector<16x32xf32>
    %10 = arith.addf %6, %9 : vector<16x32xf32>
    %c0_9 = arith.constant 0 : index
    %c0_10 = arith.constant 0 : index
    %11 = vector.load %arg6[%c0_9, %c0_10] : memref<16x32xf32, #tpu.memory_space<vmem>>, vector<16x32xf32>
    tpu.vector_store %arg6[%c0_9, %c0_10], %10 {strides = array<i32>} : memref<16x32xf32, #tpu.memory_space<vmem>>, vector<16x32xf32>,
    return
  }
  func.func @transform_0(%arg0: i32) -> (i32, i32) {
    %c0_i32 = arith.constant 0 : i32
    %c0_i32_0 = arith.constant 0 : i32
    return %arg0, %c0_i32 : i32, i32
  }
  func.func @transform_1(%arg0: i32) -> (i32, i32) {
    %c0_i32 = arith.constant 0 : i32
    %c0_i32_0 = arith.constant 0 : i32
    %c0_i32_1 = arith.constant 0 : i32
    return %c0_i32, %c0_i32_0 : i32, i32
  }
  func.func @transform_2(%arg0: i32) -> (i32, i32) {
    %c0_i32 = arith.constant 0 : i32
    %c0_i32_0 = arith.constant 0 : i32
    %c0_i32_1 = arith.constant 0 : i32
    return %c0_i32, %c0_i32_0 : i32, i32
  }
  func.func @transform_3(%arg0: i32) -> (i32, i32) {
    %c0_i32 = arith.constant 0 : i32
    %c0_i32_0 = arith.constant 0 : i32
    %c0_i32_1 = arith.constant 0 : i32
    return %c0_i32, %c0_i32_0 : i32, i32
  }
  func.func @transform_4(%arg0: i32) -> (i32, i32) {
    %c0_i32 = arith.constant 0 : i32
    %c0_i32_0 = arith.constant 0 : i32
    return %arg0, %c0_i32 : i32, i32
  }
  func.func @transform_5(%arg0: i32) -> (i32, i32) {
    %c0_i32 = arith.constant 0 : i32
    %c0_i32_0 = arith.constant 0 : i32
    return %arg0, %c0_i32 : i32, i32
  }
}

</mosaic_0001>

<llo_original>
// kernel: dino2_block.5
$region0: #{dino2_block.5}
  #allocation0 [shape = 'u32[]', space=smem, size = 0x4, offset = 0x4, fixed_abs, tag = 'smem constant byte address 0x4 - core index']
  #allocation1 [shape = 'u32[144,128]{1,0:T(1,128)}', space=vmem, size = 0x12000, scoped, tag = 'internal scratch']
  %s0 = inlined_call_operand.vmem [shape: f32[16,32], index: 0, kind: input, shape index: {}]
  %s1 = inlined_call_operand.vmem [shape: f32[1,32], index: 1, kind: input, shape index: {}]
  %s2 = inlined_call_operand.vmem [shape: f32[1,32], index: 2, kind: input, shape index: {}]
  %s3 = inlined_call_operand.vmem [shape: bf16[32,96], index: 3, kind: input, shape index: {}]
  %s4 = inlined_call_operand.vmem [shape: f32[1,96], index: 4, kind: input, shape index: {}]
  %s5 = inlined_call_operand.vmem [shape: bf16[16,32], index: 5, kind: output, shape index: {0}]
  %s6 = inlined_call_operand.vmem [shape: bf16[16,32], index: 6, kind: output, shape index: {1}]
  %s7 = inlined_call_operand.vmem [shape: bf16[16,32], index: 7, kind: output, shape index: {2}]
  %8 = xla_tuple %s5, %s6, %s7
  %s9 = sld [smem:[#allocation0]]
  $region46: #{dino2_block.5} parent=0
    _
  %s11 = ssub.s32 1, %s9
  %s12 = scalar_select 0, %s11, %s9
  // Predicated region
  $region2: #{dino2_block.5} parent=0 // pred_check
    _
  $region3: #{dino2_block.5} parent=0 // pred_check_branch
    %14 = sbr.rel (0) target = $region5
  $region4: #{dino2_block.5} parent=0 // pred_region
    _
  $region5: #{dino2_block.5} parent=0 // pred_fallthru
    _
  // Predicated region
  $region6: #{dino2_block.5} parent=0 // pred_check
    _
  $region7: #{dino2_block.5} parent=0 // pred_check_branch
    %16 = sbr.rel (0) target = $region9
  $region8: #{dino2_block.5} parent=0 // pred_region
    _
  $region9: #{dino2_block.5} parent=0 // pred_fallthru
    _
  // Predicated region
  $region10: #{dino2_block.5} parent=0 // pred_check
    _
  $region11: #{dino2_block.5} parent=0 // pred_check_branch
    %18 = sbr.rel (0) target = $region13
  $region12: #{dino2_block.5} parent=0 // pred_region
    _
  $region13: #{dino2_block.5} parent=0 // pred_fallthru
    _
  // Predicated region
  $region14: #{dino2_block.5} parent=0 // pred_check
    _
  $region15: #{dino2_block.5} parent=0 // pred_check_branch
    %20 = sbr.rel (0) target = $region17
  $region16: #{dino2_block.5} parent=0 // pred_region
    _
  $region17: #{dino2_block.5} parent=0 // pred_fallthru
    _
  // Predicated region
  $region18: #{dino2_block.5} parent=0 // pred_check
    _
  $region19: #{dino2_block.5} parent=0 // pred_check_branch
    %22 = sbr.rel (0) target = $region21
  $region20: #{dino2_block.5} parent=0 // pred_region
    _
  $region21: #{dino2_block.5} parent=0 // pred_fallthru
    _
  %v24 = vld [vmem:[%s0] sm:$0xff]
  %v25 = vld [vmem:[%s0 + $0x8] sm:$0xff]
  %vm26 = vcmask 261120
  %v27 = vsel %vm26, %v24, 0.0
  %28 = vadd.xlane.f32.xlu0 %v27
  %v29 = vpop.xlane.xlu0 %28
  %v30 = vsel %vm26, %v25, 0.0
  %31 = vadd.xlane.f32.xlu0 %v30
  %v32 = vpop.xlane.xlu0 %31
  %v33 = vrcp.pop 32.0
  %v34 = vmul.f32 %v29, %v33
  %v35 = vmul.f32 %v32, %v33
  %v36 = vsub.f32 %v24, %v34
  %v37 = vsub.f32 %v25, %v35
  %v38 = vmul.f32 %v36, %v36
  %v39 = vmul.f32 %v37, %v37
  %v40 = vsel %vm26, %v38, 0.0
  %41 = vadd.xlane.f32.xlu0 %v40
  %v42 = vpop.xlane.xlu0 %41
  %v43 = vsel %vm26, %v39, 0.0
  %44 = vadd.xlane.f32.xlu0 %v43
  %v45 = vpop.xlane.xlu0 %44
  %v46 = vmul.f32 %v42, %v33
  %v47 = vmul.f32 %v45, %v33
  %v48 = vadd.f32 %v46, 1e-06
  %v49 = vadd.f32 %v47, 1e-06
  %v50 = vrsqrt.pop %v48
  %v51 = vrsqrt.pop %v49
  %v52 = vmul.f32 %v36, %v50
  %v53 = vmul.f32 %v37, %v51
  %v54 = vld [vmem:[%s1] sm:$0x1]
  %v56 = vlaneseq
  %v57 = vshrl.u32 %v56, 7
  %v58 = vsub.s32 0, %v57
  %v59 = vrot.slane %v54, %v58
  %v61 = vmul.f32 %v52, %v59
  %v62 = vmul.f32 %v53, %v59
  %v63 = vld [vmem:[%s2] sm:$0x1]
  %v65 = vlaneseq
  %v66 = vshrl.u32 %v65, 7
  %v67 = vsub.s32 0, %v66
  %v68 = vrot.slane %v63, %v67
  %v70 = vadd.f32 %v61, %v68
  %v71 = vadd.f32 %v62, %v68
  %v72 = vpack.c.bf16 %v71, %v70
  %v73 = vld [vmem:[%s3] sm:$0xf]
  %v74 = vld [vmem:[%s3 + $0x4] sm:$0xf]
  %v75 = vld [vmem:[%s3 + $0x8] sm:$0xf]
  %v76 = vld [vmem:[%s3 + $0xc] sm:$0xf]
  %v77 = vld [vmem:[%s4] sm:$0x1]
  %v79 = vlaneseq
  %v80 = vshrl.u32 %v79, 7
  %v81 = vsub.s32 0, %v80
  %v82 = vrot.slane %v77, %v81
  %v88 = vunpack.c.l.b16 %v73
  %v89 = vunpack.c.l.b16 %v74
  %v90 = vunpack.c.l.b16 %v75
  %v91 = vunpack.c.l.b16 %v76
  %v92 = vpack.c.b16 %v89, %v88
  %v93 = vpack.c.b16 %v91, %v90
  %v97 = vsel %vm26, %v72, 0
  %99 = vmatprep.subr.bf16.mxu0 0
  %100 = vmatpush1.bf16.msra.mxu0 %v92
  %101 = vmatprep.subr.bf16.mxu0 0
  %102 = vmatpush1.bf16.msra.mxu0 %v93
  %103 = vmatprep.subr.bf16.mxu0 0
  %104 = vmatpush1.bf16.msra.mxu0 0
  %105 = vmatprep.subr.bf16.mxu0 0
  %106 = vmatpush1.bf16.msra.mxu0 0
  %107 = vmatprep.subr.bf16.mxu0 0
  %108 = vmatpush1.bf16.msra.mxu0 0
  %109 = vmatprep.subr.bf16.mxu0 0
  %110 = vmatpush1.bf16.msra.mxu0 0
  %111 = vmatprep.subr.bf16.mxu0 0
  %112 = vmatpush1.bf16.msra.mxu0 0
  %113 = vmatprep.subr.bf16.mxu0 0
  %114 = vmatpush1.bf16.msra.mxu0 0
  %115 = vmatprep.subr.bf16.mxu0 0
  %116 = vmatpush1.bf16.msra.mxu0 0
  %117 = vmatprep.subr.bf16.mxu0 0
  %118 = vmatpush1.bf16.msra.mxu0 0
  %119 = vmatprep.subr.bf16.mxu0 0
  %120 = vmatpush1.bf16.msra.mxu0 0
  %121 = vmatprep.subr.bf16.mxu0 0
  %122 = vmatpush1.bf16.msra.mxu0 0
  %123 = vmatprep.subr.bf16.mxu0 0
  %124 = vmatpush1.bf16.msra.mxu0 0
  %125 = vmatprep.subr.bf16.mxu0 0
  %126 = vmatpush1.bf16.msra.mxu0 0
  %127 = vmatprep.subr.bf16.mxu0 0
  %128 = vmatpush1.bf16.msra.mxu0 0
  %129 = vmatprep.subr.bf16.mxu0 0
  %130 = vmatpush1.bf16.msra.mxu0 0
  %131 = vmatprep.mubr.bf16.mxu0 0
  %132 = vmatmul.mubr.bf16.gmra.mrb[0].mxu0 %v97
  %v133 = vpop.f32.mrb[0].mxu0
  %v134 = vadd.f32 %v82, %v133
  %v135 = vpop.f32.mrb[0].mxu0
  %v136 = vpop.f32.mrb[0].mxu0
  %v137 = vadd.f32 %v82, %v136
  %v138 = vpop.f32.mrb[0].mxu0
  %139 = vdwg.mxu0
  %v140 = vpack.c.bf16 %v137, %v134
  %v142 = vunpack.c.l.b16 %v140
  %v143 = vunpack.c.h.b16 %v140
  %v144 = vpack.c.b16 %v142, %v142
  %v145 = vpack.c.b16 %v143, %v143
  %vm148 = vcmask 257024
  %149 = vst.msk [vmem:[%s5] sm:$0xf] %vm148, %v144
  %150 = vst.msk [vmem:[%s5 + $0x4] sm:$0xf] %vm148, %v145
  %151 = vrot.lane.b32.xlu0 %v144, 96
  %v152 = vpop.permute.xlu0 %151
  %153 = vrot.lane.b32.xlu0 %v145, 96
  %v154 = vpop.permute.xlu0 %153
  %157 = vst.msk [vmem:[%s6] sm:$0xf] %vm148, %v152
  %158 = vst.msk [vmem:[%s6 + $0x4] sm:$0xf] %vm148, %v154
  %159 = vrot.lane.b32.xlu0 %v144, 64
  %v160 = vpop.permute.xlu0 %159
  %161 = vrot.lane.b32.xlu0 %v145, 64
  %v162 = vpop.permute.xlu0 %161
  %165 = vst.msk [vmem:[%s7] sm:$0xf] %vm148, %v160
  %166 = vst.msk [vmem:[%s7 + $0x4] sm:$0xf] %vm148, %v162
  // Predicated region
  $region22: #{dino2_block.5} parent=0 // pred_check
    _
  $region23: #{dino2_block.5} parent=0 // pred_check_branch
    %168 = sbr.rel (0) target = $region25
  $region24: #{dino2_block.5} parent=0 // pred_region
    _
  $region25: #{dino2_block.5} parent=0 // pred_fallthru
    _
  // Predicated region
  $region26: #{dino2_block.5} parent=0 // pred_check
    _
  $region27: #{dino2_block.5} parent=0 // pred_check_branch
    %170 = sbr.rel (0) target = $region29
  $region28: #{dino2_block.5} parent=0 // pred_region
    _
  $region29: #{dino2_block.5} parent=0 // pred_fallthru
    _
  // Predicated region
  $region30: #{dino2_block.5} parent=0 // pred_check
    _
  $region31: #{dino2_block.5} parent=0 // pred_check_branch
    %172 = sbr.rel (0) target = $region33
  $region32: #{dino2_block.5} parent=0 // pred_region
    _
  $region33: #{dino2_block.5} parent=0 // pred_fallthru
    _
  // Predicated region
  $region34: #{dino2_block.5} parent=0 // pred_check
    _
  $region35: #{dino2_block.5} parent=0 // pred_check_branch
    %174 = sbr.rel (0) target = $region37
  $region36: #{dino2_block.5} parent=0 // pred_region
    _
  $region37: #{dino2_block.5} parent=0 // pred_fallthru
    _
  // Predicated region
  $region38: #{dino2_block.5} parent=0 // pred_check
    _
  $region39: #{dino2_block.5} parent=0 // pred_check_branch
    %176 = sbr.rel (0) target = $region41
  $region40: #{dino2_block.5} parent=0 // pred_region
    _
  $region41: #{dino2_block.5} parent=0 // pred_fallthru
    _
  // Predicated region
  $region42: #{dino2_block.5} parent=0 // pred_check
    _
  $region43: #{dino2_block.5} parent=0 // pred_check_branch
    %178 = sbr.rel (0) target = $region45
  $region44: #{dino2_block.5} parent=0 // pred_region
    _
  $region45: #{dino2_block.5} parent=0 // pred_fallthru
    _

// kernel: dino2_block.6
$region0: #{dino2_block.6}
  #allocation0 [shape = 'u32[]', space=smem, size = 0x4, offset = 0x4, fixed_abs, tag = 'smem constant byte address 0x4 - core index']
  #allocation1 [shape = 'u32[144,128]{1,0:T(1,128)}', space=vmem, size = 0x12000, scoped, tag = 'internal scratch']
  %s0 = inlined_call_operand.vmem [shape: bf16[2,8,32], index: 0, kind: input, shape index: {}]
  %s1 = inlined_call_operand.vmem [shape: bf16[2,8,32], index: 1, kind: input, shape index: {}]
  %s2 = inlined_call_operand.vmem [shape: bf16[2,8,32], index: 2, kind: input, shape index: {}]
  %s3 = inlined_call_operand.vmem [shape: bf16[2,8,32], index: 3, kind: output, shape index: {}]
  %s4 = sld [smem:[#allocation0]]
  $region45: #{dino2_block.6} parent=0
    _
  %s6 = ssub.s32 1, %s4
  %s7 = scalar_select 0, %s6, %s4
  loop: start=0, step=1, limit=4
  $region2: #{dino2_block.6} parent=0 // loop_pre_header
    _
  $region3: #{dino2_block.6} parent=0 // loop_header
    %s9 = sphi 0, %s13
    %p10 = scmp.ge.s32.totalorder %s9, 4
    %s16 = sphi 0, %s28
    %s17 = sphi 0, %s24
    %s18 = sphi 0, %s16
    %s19 = sphi 0, %s17
    %s20 = sphi 0, %s18
    %s21 = sphi 0, %s19
    %s33 = sphi 0, %s35
    %s36 = sphi 0, %s33
    %s37 = sphi 0, %s36
    %s53 = sphi 0, %s37
    %s59 = sphi 0, %s61
    %s62 = sphi 0, %s59
    %s63 = sphi 0, %s62
    %s79 = sphi 0, %s63
    %s85 = sphi 0, %s87
    %s88 = sphi 0, %s85
    %s89 = sphi 0, %s88
    %s105 = sphi 0, %s89
    %s113 = sphi 0, %s115
    %s116 = sphi 0, %s113
    %s117 = sphi 0, %s116
    %s133 = sphi 0, %s117
  $region4: #{dino2_block.6} parent=0 // loop_header_branch
    %12 = sbr.rel (%p10) target = $region8
  $region5: #{dino2_block.6} parent=0 // loop_body
    %s14 = ssub.s32 %s9, 1
    %s15 = ssub.s32 %s9, 2
    %s22 = sadd.s32 1, %s17
    %p23 = scmp.ge.s32.totalorder %s22, 1
    %s24 = scalar_select %p23, 0, %s22
    %s25 = sadd.s32 1, %s16
    %s26 = scalar_select %p23, %s25, %s16
    %p27 = scmp.ge.s32.totalorder %s26, 2
    %s28 = scalar_select %p27, 0, %s26
    %s29 = ssub.s32 %s16, %s28
    %s30 = ssub.s32 %s17, %s24
    %s31 = sor.u32 %s29, %s30
    %p32 = scmp.eq.s32.totalorder %s31, 0
    %s34 = sadd.s32 %s33, 1
    %s35 = scalar_select %p32, %s33, %s34
    %p38 = pneg %p32
    %p39 = scmp.eq.s32.totalorder %s9, 1
    %p40 = por %p38, %p39
    %p41 = scmp.ne.s32.totalorder %s33, %s36
    %p42 = scmp.eq.s32.totalorder %s9, 0
    %p43 = por %p41, %p42
    %p44 = scmp.ne.s32.totalorder %s33, %s36
    %p45 = scmp.eq.s32.totalorder %s14, 1
    %p46 = por %p44, %p45
    %p47 = scmp.ne.s32.totalorder %s36, %s37
    %p48 = scmp.eq.s32.totalorder %s14, 0
    %p49 = por %p47, %p48
    %p50 = scmp.ne.s32.totalorder %s36, %s37
    %p51 = scmp.eq.s32.totalorder %s15, 1
    %p52 = por %p50, %p51
    %p54 = scmp.ne.s32.totalorder %s37, %s53
    %p55 = scmp.eq.s32.totalorder %s15, 0
    %p56 = por %p54, %p55
    %s57 = ssub.s32 %s16, %s28
    %p58 = scmp.eq.s32.totalorder %s57, 0
    %s60 = sadd.s32 %s59, 1
    %s61 = scalar_select %p58, %s59, %s60
    %p64 = pneg %p58
    %p65 = scmp.eq.s32.totalorder %s9, 1
    %p66 = por %p64, %p65
    %p67 = scmp.ne.s32.totalorder %s59, %s62
    %p68 = scmp.eq.s32.totalorder %s9, 0
    %p69 = por %p67, %p68
    %p70 = scmp.ne.s32.totalorder %s59, %s62
    %p71 = scmp.eq.s32.totalorder %s14, 1
    %p72 = por %p70, %p71
    %p73 = scmp.ne.s32.totalorder %s62, %s63
    %p74 = scmp.eq.s32.totalorder %s14, 0
    %p75 = por %p73, %p74
    %p76 = scmp.ne.s32.totalorder %s62, %s63
    %p77 = scmp.eq.s32.totalorder %s15, 1
    %p78 = por %p76, %p77
    %p80 = scmp.ne.s32.totalorder %s63, %s79
    %p81 = scmp.eq.s32.totalorder %s15, 0
    %p82 = por %p80, %p81
    %s83 = ssub.s32 %s16, %s28
    %p84 = scmp.eq.s32.totalorder %s83, 0
    %s86 = sadd.s32 %s85, 1
    %s87 = scalar_select %p84, %s85, %s86
    %p90 = pneg %p84
    %p91 = scmp.eq.s32.totalorder %s9, 1
    %p92 = por %p90, %p91
    %p93 = scmp.ne.s32.totalorder %s85, %s88
    %p94 = scmp.eq.s32.totalorder %s9, 0
    %p95 = por %p93, %p94
    %p96 = scmp.ne.s32.totalorder %s85, %s88
    %p97 = scmp.eq.s32.totalorder %s14, 1
    %p98 = por %p96, %p97
    %p99 = scmp.ne.s32.totalorder %s88, %s89
    %p100 = scmp.eq.s32.totalorder %s14, 0
    %p101 = por %p99, %p100
    %p102 = scmp.ne.s32.totalorder %s88, %s89
    %p103 = scmp.eq.s32.totalorder %s15, 1
    %p104 = por %p102, %p103
    %p106 = scmp.ne.s32.totalorder %s89, %s105
    %p107 = scmp.eq.s32.totalorder %s15, 0
    %p108 = por %p106, %p107
    %s109 = ssub.s32 %s16, %s28
    %s110 = ssub.s32 %s17, %s24
    %s111 = sor.u32 %s109, %s110
    %p112 = scmp.eq.s32.totalorder %s111, 0
    %s114 = sadd.s32 %s113, 1
    %s115 = scalar_select %p112, %s113, %s114
    %p118 = pneg %p112
    %p119 = scmp.eq.s32.totalorder %s9, 1
    %p120 = por %p118, %p119
    %p121 = scmp.ne.s32.totalorder %s113, %s116
    %p122 = scmp.eq.s32.totalorder %s9, 0
    %p123 = por %p121, %p122
    %p124 = scmp.ne.s32.totalorder %s113, %s116
    %p125 = scmp.eq.s32.totalorder %s14, 1
    %p126 = por %p124, %p125
    %p127 = scmp.ne.s32.totalorder %s116, %s117
    %p128 = scmp.eq.s32.totalorder %s14, 0
    %p129 = por %p127, %p128
    %p130 = scmp.ne.s32.totalorder %s116, %s117
    %p131 = scmp.eq.s32.totalorder %s15, 1
    %p132 = por %p130, %p131
    %p134 = scmp.ne.s32.totalorder %s117, %s133
    %p135 = scmp.eq.s32.totalorder %s15, 0
    %p136 = por %p134, %p135
    %p137 = scmp.le.s32.totalorder 1, %s9
    %p138 = scmp.lt.s32.totalorder %s9, 3
    %p139 = pnand %p137, %p138
    %p140 = pneg %p139
    // Predicated region
    $region9: #{dino2_block.6} parent=5 // pred_check
      _
    $region10: #{dino2_block.6} parent=5 // pred_check_branch
      %142 = sbr.rel (%p139) target = $region12
    $region11: #{dino2_block.6} parent=5 // pred_region
      %s143 = ssub.s32 %s9, 1
    $region12: #{dino2_block.6} parent=5 // pred_fallthru
      _
    %p144 = scmp.lt.s32.totalorder %s9, 2
    // Predicated region
    $region13: #{dino2_block.6} parent=5 // pred_check
      %p145 = pneg %p144
    $region14: #{dino2_block.6} parent=5 // pred_check_branch
      %147 = sbr.rel (%p145) target = $region16
    $region15: #{dino2_block.6} parent=5 // pred_region
      // Predicated region
      $region17: #{dino2_block.6} parent=15 // pred_check
        %p148 = pneg %p43
      $region18: #{dino2_block.6} parent=15 // pred_check_branch
        %150 = sbr.rel (%p148) target = $region20
      $region19: #{dino2_block.6} parent=15 // pred_region
        %p151 = scmp.lt.s32.totalorder %s16, 1
        %s152 = scalar_select %p151, %s16, 1
        %p153 = scmp.lt.s32.totalorder %s17, 0
        %s154 = scalar_select %p153, %s17, 0
        %s155 = sadd.s32 %s154, %s152
        %s156 = smul.addr %s155, 4
        %s157 = scalar_lea.vmem %s0, %s156
      $region20: #{dino2_block.6} parent=15 // pred_fallthru
        _
      // Predicated region
      $region21: #{dino2_block.6} parent=15 // pred_check
        %p158 = pneg %p69
      $region22: #{dino2_block.6} parent=15 // pred_check_branch
        %160 = sbr.rel (%p158) target = $region24
      $region23: #{dino2_block.6} parent=15 // pred_region
        %p161 = scmp.lt.s32.totalorder %s16, 1
        %s162 = scalar_select %p161, %s16, 1
        %s163 = smul.addr %s162, 4
        %s164 = scalar_lea.vmem %s1, %s163
      $region24: #{dino2_block.6} parent=15 // pred_fallthru
        _
      // Predicated region
      $region25: #{dino2_block.6} parent=15 // pred_check
        %p165 = pneg %p95
      $region26: #{dino2_block.6} parent=15 // pred_check_branch
        %167 = sbr.rel (%p165) target = $region28
      $region27: #{dino2_block.6} parent=15 // pred_region
        %p168 = scmp.lt.s32.totalorder %s16, 1
        %s169 = scalar_select %p168, %s16, 1
        %s170 = smul.addr %s169, 4
        %s171 = scalar_lea.vmem %s2, %s170
      $region28: #{dino2_block.6} parent=15 // pred_fallthru
        _
    $region16: #{dino2_block.6} parent=5 // pred_fallthru
      _
    %p172 = scmp.le.s32.totalorder 1, %s9
    %p173 = scmp.lt.s32.totalorder %s9, 3
    %p174 = pnand %p172, %p173
    %p175 = pneg %p174
    // Predicated region
    $region29: #{dino2_block.6} parent=5 // pred_check
      _
    $region30: #{dino2_block.6} parent=5 // pred_check_branch
      %177 = sbr.rel (%p174) target = $region32
    $region31: #{dino2_block.6} parent=5 // pred_region
      %s178 = ssub.s32 %s9, 1
      %p179 = scmp.lt.s32.totalorder %s18, 1
      %s180 = scalar_select %p179, %s18, 1
      %p181 = scmp.lt.s32.totalorder %s19, 0
      %s182 = scalar_select %p181, %s19, 0
      %s183 = sadd.s32 %s182, %s180
      %s184 = smul.addr %s183, 4
      %s185 = scalar_lea.vmem %s0, %s184
      %p186 = pneg %p49
      %p187 = pneg %p46
      %p188 = scmp.lt.s32.totalorder %s18, 1
      %s189 = scalar_select %p188, %s18, 1
      %s190 = smul.addr %s189, 4
      %s191 = scalar_lea.vmem %s1, %s190
      %p192 = pneg %p75
      %p193 = pneg %p72
      %p194 = scmp.lt.s32.totalorder %s18, 1
      %s195 = scalar_select %p194, %s18, 1
      %s196 = smul.addr %s195, 4
      %s197 = scalar_lea.vmem %s2, %s196
      %p198 = pneg %p101
      %p199 = pneg %p98
      %p200 = pneg %p129
      %p201 = pneg %p126
      %p202 = scmp.lt.s32.totalorder %s18, 1
      %s203 = scalar_select %p202, %s18, 1
      %p204 = scmp.lt.s32.totalorder %s19, 0
      %s205 = scalar_select %p204, %s19, 0
      %s206 = sadd.s32 %s205, %s203
      %s207 = smul.addr %s206, 4
      %s208 = scalar_lea.vmem %s3, %s207
      %p209 = scmp.lt.s32.totalorder %s18, 1
      %s210 = scalar_select %p209, %s18, 1
      %p211 = scmp.lt.s32.totalorder %s19, 0
      %s212 = scalar_select %p211, %s19, 0
      %s213 = sadd.s32 %s212, %s210
      %s214 = smul.addr %s213, 4
      %s215 = scalar_lea.vmem %s0, %s214
      %p216 = scmp.lt.s32.totalorder %s18, 1
      %s217 = scalar_select %p216, %s18, 1
      %s218 = smul.addr %s217, 4
      %s219 = scalar_lea.vmem %s1, %s218
      %p220 = scmp.lt.s32.totalorder %s18, 1
      %s221 = scalar_select %p220, %s18, 1
      %s222 = smul.addr %s221, 4
      %s223 = scalar_lea.vmem %s2, %s222
      %p224 = scmp.lt.s32.totalorder %s18, 1
      %s225 = scalar_select %p224, %s18, 1
      %p226 = scmp.lt.s32.totalorder %s19, 0
      %s227 = scalar_select %p226, %s19, 0
      %s228 = sadd.s32 %s227, %s225
      %s229 = smul.addr %s228, 4
      %s230 = scalar_lea.vmem %s3, %s229
      %v232 = vld [vmem:[%s215] sm:$0xf]
      %v233 = vld [vmem:[%s219] sm:$0xf]
      %v234 = vld [vmem:[%s223] sm:$0xf]
      %vm235 = vcmask 130048
      %v237 = vsel %vm235, %v232, 0
      %v240 = vsel %vm235, %v233, 0
      %242 = vmatprep.subr.bf16.mxu0 0
      %243 = vmatpush1.bf16.xpose.msra.mxu0 %v240
      %244 = vmatprep.subr.bf16.mxu0 0
      %245 = vmatpush1.bf16.xpose.msra.mxu0 0
      %246 = vmatprep.subr.bf16.mxu0 0
      %247 = vmatpush1.bf16.xpose.msra.mxu0 0
      %248 = vmatprep.subr.bf16.mxu0 0
      %249 = vmatpush1.bf16.xpose.msra.mxu0 0
      %250 = vmatprep.subr.bf16.mxu0 0
      %251 = vmatpush1.bf16.xpose.msra.mxu0 0
      %252 = vmatprep.subr.bf16.mxu0 0
      %253 = vmatpush1.bf16.xpose.msra.mxu0 0
      %254 = vmatprep.subr.bf16.mxu0 0
      %255 = vmatpush1.bf16.xpose.msra.mxu0 0
      %256 = vmatprep.subr.bf16.mxu0 0
      %257 = vmatpush1.bf16.xpose.msra.mxu0 0
      %258 = vmatprep.subr.bf16.mxu0 0
      %259 = vmatpush1.bf16.xpose.msra.mxu0 0
      %260 = vmatprep.subr.bf16.mxu0 0
      %261 = vmatpush1.bf16.xpose.msra.mxu0 0
      %262 = vmatprep.subr.bf16.mxu0 0
      %263 = vmatpush1.bf16.xpose.msra.mxu0 0
      %264 = vmatprep.subr.bf16.mxu0 0
      %265 = vmatpush1.bf16.xpose.msra.mxu0 0
      %266 = vmatprep.subr.bf16.mxu0 0
      %267 = vmatpush1.bf16.xpose.msra.mxu0 0
      %268 = vmatprep.subr.bf16.mxu0 0
      %269 = vmatpush1.bf16.xpose.msra.mxu0 0
      %270 = vmatprep.subr.bf16.mxu0 0
      %271 = vmatpush1.bf16.xpose.msra.mxu0 0
      %272 = vmatprep.subr.bf16.mxu0 0
      %273 = vmatpush1.bf16.xpose.msra.mxu0 0
      %274 = vmatprep.mubr.bf16.mxu0 0
      %275 = vmatmul.mubr.bf16.gmra.mrb[0].mxu0 %v237
      %v276 = vpop.f32.mrb[0].mxu0
      %v277 = vadd.f32 0.0, %v276
      %v278 = vpop.f32.mrb[0].mxu0
      %v279 = vpop.f32.mrb[0].mxu0
      %v280 = vpop.f32.mrb[0].mxu0
      %281 = vdwg.mxu0
      %v282 = vmul.f32 %v277, 0.25
      %vm283 = vcmask 64512
      %v284 = vsel %vm283, %v282, -inf
      %285 = vmax.xlane.f32.xlu0 %v284
      %v286 = vpop.xlane.xlu0 %285
      %v287 = vsub.f32 %v282, %v286
      %v288 = vmul.f32 %v287, 1.442695
      %v289 = vpow.pop %v288
      %v290 = vsel %vm283, %v289, 0.0
      %291 = vadd.xlane.f32.xlu0 %v290
      %v292 = vpop.xlane.xlu0 %291
      %v293 = vrcp.pop %v292
      %v294 = vpack.c.bf16 %v289, %v289
      %v296 = vsel %vm283, %v294, 0
      %vm298 = vcmask 1043456
      %v300 = vsel %vm298, %v234, 0
      %302 = vmatprep.subr.bf16.mxu0 0
      %303 = vmatpush1.bf16.msra.mxu0 %v300
      %304 = vmatprep.subr.bf16.mxu0 0
      %305 = vmatpush1.bf16.msra.mxu0 0
      %306 = vmatprep.subr.bf16.mxu0 0
      %307 = vmatpush1.bf16.msra.mxu0 0
      %308 = vmatprep.subr.bf16.mxu0 0
      %309 = vmatpush1.bf16.msra.mxu0 0
      %310 = vmatprep.subr.bf16.mxu0 0
      %311 = vmatpush1.bf16.msra.mxu0 0
      %312 = vmatprep.subr.bf16.mxu0 0
      %313 = vmatpush1.bf16.msra.mxu0 0
      %314 = vmatprep.subr.bf16.mxu0 0
      %315 = vmatpush1.bf16.msra.mxu0 0
      %316 = vmatprep.subr.bf16.mxu0 0
      %317 = vmatpush1.bf16.msra.mxu0 0
      %318 = vmatprep.subr.bf16.mxu0 0
      %319 = vmatpush1.bf16.msra.mxu0 0
      %320 = vmatprep.subr.bf16.mxu0 0
      %321 = vmatpush1.bf16.msra.mxu0 0
      %322 = vmatprep.subr.bf16.mxu0 0
      %323 = vmatpush1.bf16.msra.mxu0 0
      %324 = vmatprep.subr.bf16.mxu0 0
      %325 = vmatpush1.bf16.msra.mxu0 0
      %326 = vmatprep.subr.bf16.mxu0 0
      %327 = vmatpush1.bf16.msra.mxu0 0
      %328 = vmatprep.subr.bf16.mxu0 0
      %329 = vmatpush1.bf16.msra.mxu0 0
      %330 = vmatprep.subr.bf16.mxu0 0
      %331 = vmatpush1.bf16.msra.mxu0 0
      %332 = vmatprep.subr.bf16.mxu0 0
      %333 = vmatpush1.bf16.msra.mxu0 0
      %334 = vmatprep.mubr.bf16.mxu0 0
      %335 = vmatmul.mubr.bf16.gmra.mrb[0].mxu0 %v296
      %v336 = vpop.f32.mrb[0].mxu0
      %v337 = vadd.f32 0.0, %v336
      %v338 = vpop.f32.mrb[0].mxu0
      %v339 = vpop.f32.mrb[0].mxu0
      %v340 = vpop.f32.mrb[0].mxu0
      %341 = vdwg.mxu0
      %v342 = vmul.f32 %v337, %v293
      %v344 = vunpack.c.l.b16 %v232
      %v345 = vpack.c.b16 %v344, %v344
      %346 = vrot.lane.b32.xlu0 %v345, 112
      %v347 = vpop.permute.xlu0 %346
      %v349 = vunpack.c.l.b16 %v233
      %v350 = vpack.c.b16 %v349, %v349
      %351 = vrot.lane.b32.xlu0 %v350, 112
      %v352 = vpop.permute.xlu0 %351
      %v354 = vsel %vm235, %v347, 0
      %v357 = vsel %vm235, %v352, 0
      %359 = vmatprep.subr.bf16.mxu0 0
      %360 = vmatpush1.bf16.xpose.msra.mxu0 %v357
      %361 = vmatprep.subr.bf16.mxu0 0
      %362 = vmatpush1.bf16.xpose.msra.mxu0 0
      %363 = vmatprep.subr.bf16.mxu0 0
      %364 = vmatpush1.bf16.xpose.msra.mxu0 0
      %365 = vmatprep.subr.bf16.mxu0 0
      %366 = vmatpush1.bf16.xpose.msra.mxu0 0
      %367 = vmatprep.subr.bf16.mxu0 0
      %368 = vmatpush1.bf16.xpose.msra.mxu0 0
      %369 = vmatprep.subr.bf16.mxu0 0
      %370 = vmatpush1.bf16.xpose.msra.mxu0 0
      %371 = vmatprep.subr.bf16.mxu0 0
      %372 = vmatpush1.bf16.xpose.msra.mxu0 0
      %373 = vmatprep.subr.bf16.mxu0 0
      %374 = vmatpush1.bf16.xpose.msra.mxu0 0
      %375 = vmatprep.subr.bf16.mxu0 0
      %376 = vmatpush1.bf16.xpose.msra.mxu0 0
      %377 = vmatprep.subr.bf16.mxu0 0
      %378 = vmatpush1.bf16.xpose.msra.mxu0 0
      %379 = vmatprep.subr.bf16.mxu0 0
      %380 = vmatpush1.bf16.xpose.msra.mxu0 0
      %381 = vmatprep.subr.bf16.mxu0 0
      %382 = vmatpush1.bf16.xpose.msra.mxu0 0
      %383 = vmatprep.subr.bf16.mxu0 0
      %384 = vmatpush1.bf16.xpose.msra.mxu0 0
      %385 = vmatprep.subr.bf16.mxu0 0
      %386 = vmatpush1.bf16.xpose.msra.mxu0 0
      %387 = vmatprep.subr.bf16.mxu0 0
      %388 = vmatpush1.bf16.xpose.msra.mxu0 0
      %389 = vmatprep.subr.bf16.mxu0 0
      %390 = vmatpush1.bf16.xpose.msra.mxu0 0
      %391 = vmatprep.mubr.bf16.mxu0 0
      %392 = vmatmul.mubr.bf16.gmra.mrb[0].mxu0 %v354
      %v393 = vpop.f32.mrb[0].mxu0
      %v394 = vadd.f32 0.0, %v393
      %v395 = vpop.f32.mrb[0].mxu0
      %v396 = vpop.f32.mrb[0].mxu0
      %v397 = vpop.f32.mrb[0].mxu0
      %398 = vdwg.mxu0
      %v399 = vmul.f32 %v394, 0.25
      %v400 = vsel %vm283, %v399, -inf
      %401 = vmax.xlane.f32.xlu0 %v400
      %v402 = vpop.xlane.xlu0 %401
      %v403 = vsub.f32 %v399, %v402
      %v404 = vmul.f32 %v403, 1.442695
      %v405 = vpow.pop %v404
      %v406 = vsel %vm283, %v405, 0.0
      %407 = vadd.xlane.f32.xlu0 %v406
      %v408 = vpop.xlane.xlu0 %407
      %v409 = vrcp.pop %v408
      %v410 = vpack.c.bf16 %v405, %v405
      %v412 = vunpack.c.l.b16 %v234
      %v413 = vpack.c.b16 %v412, %v412
      %414 = vrot.lane.b32.xlu0 %v413, 112
      %v415 = vpop.permute.xlu0 %414
      %v417 = vsel %vm283, %v410, 0
      %v420 = vsel %vm298, %v415, 0
      %422 = vmatprep.subr.bf16.mxu0 0
      %423 = vmatpush1.bf16.msra.mxu0 %v420
      %424 = vmatprep.subr.bf16.mxu0 0
      %425 = vmatpush1.bf16.msra.mxu0 0
      %426 = vmatprep.subr.bf16.mxu0 0
      %427 = vmatpush1.bf16.msra.mxu0 0
      %428 = vmatprep.subr.bf16.mxu0 0
      %429 = vmatpush1.bf16.msra.mxu0 0
      %430 = vmatprep.subr.bf16.mxu0 0
      %431 = vmatpush1.bf16.msra.mxu0 0
      %432 = vmatprep.subr.bf16.mxu0 0
      %433 = vmatpush1.bf16.msra.mxu0 0
      %434 = vmatprep.subr.bf16.mxu0 0
      %435 = vmatpush1.bf16.msra.mxu0 0
      %436 = vmatprep.subr.bf16.mxu0 0
      %437 = vmatpush1.bf16.msra.mxu0 0
      %438 = vmatprep.subr.bf16.mxu0 0
      %439 = vmatpush1.bf16.msra.mxu0 0
      %440 = vmatprep.subr.bf16.mxu0 0
      %441 = vmatpush1.bf16.msra.mxu0 0
      %442 = vmatprep.subr.bf16.mxu0 0
      %443 = vmatpush1.bf16.msra.mxu0 0
      %444 = vmatprep.subr.bf16.mxu0 0
      %445 = vmatpush1.bf16.msra.mxu0 0
      %446 = vmatprep.subr.bf16.mxu0 0
      %447 = vmatpush1.bf16.msra.mxu0 0
      %448 = vmatprep.subr.bf16.mxu0 0
      %449 = vmatpush1.bf16.msra.mxu0 0
      %450 = vmatprep.subr.bf16.mxu0 0
      %451 = vmatpush1.bf16.msra.mxu0 0
      %452 = vmatprep.subr.bf16.mxu0 0
      %453 = vmatpush1.bf16.msra.mxu0 0
      %454 = vmatprep.mubr.bf16.mxu0 0
      %455 = vmatmul.mubr.bf16.gmra.mrb[0].mxu0 %v417
      %v456 = vpop.f32.mrb[0].mxu0
      %v457 = vadd.f32 0.0, %v456
      %v458 = vpop.f32.mrb[0].mxu0
      %v459 = vpop.f32.mrb[0].mxu0
      %v460 = vpop.f32.mrb[0].mxu0
      %461 = vdwg.mxu0
      %v462 = vmul.f32 %v457, %v409
      %464 = vrot.lane.b32.xlu0 %v462, 16
      %v465 = vpop.permute.xlu0 %464
      %v467 = vsel %vm235, %v342, %v465
      %v468 = vpack.c.bf16 %v467, %v467
      %vm469 = vcmask 257024
      %470 = vst.msk [vmem:[%s230] sm:$0xf] %vm469, %v468
      %p471 = scmp.lt.s32.totalorder %s18, 1
      %s472 = scalar_select %p471, %s18, 1
      %p473 = scmp.lt.s32.totalorder %s19, 0
      %s474 = scalar_select %p473, %s19, 0
      %s475 = sadd.s32 %s474, %s472
      %s476 = smul.addr %s475, 4
      %s477 = scalar_lea.vmem %s3, %s476
      // Predicated region
      $region33: #{dino2_block.6} parent=31 // pred_check
        %p478 = pneg %p126
      $region34: #{dino2_block.6} parent=31 // pred_check_branch
        %480 = sbr.rel (%p478) target = $region36
      $region35: #{dino2_block.6} parent=31 // pred_region
        _
      $region36: #{dino2_block.6} parent=31 // pred_fallthru
        _
    $region32: #{dino2_block.6} parent=5 // pred_fallthru
      _
    %p481 = scmp.le.s32.totalorder 2, %s9
    // Predicated region
    $region37: #{dino2_block.6} parent=5 // pred_check
      %p482 = pneg %p481
    $region38: #{dino2_block.6} parent=5 // pred_check_branch
      %484 = sbr.rel (%p482) target = $region40
    $region39: #{dino2_block.6} parent=5 // pred_region
      %s485 = ssub.s32 %s9, 2
      // Predicated region
      $region41: #{dino2_block.6} parent=39 // pred_check
        %p486 = pneg %p132
      $region42: #{dino2_block.6} parent=39 // pred_check_branch
        %488 = sbr.rel (%p486) target = $region44
      $region43: #{dino2_block.6} parent=39 // pred_region
        %p489 = scmp.lt.s32.totalorder %s20, 1
        %s490 = scalar_select %p489, %s20, 1
        %p491 = scmp.lt.s32.totalorder %s21, 0
        %s492 = scalar_select %p491, %s21, 0
        %s493 = sadd.s32 %s492, %s490
        %s494 = smul.addr %s493, 4
        %s495 = scalar_lea.vmem %s3, %s494
      $region44: #{dino2_block.6} parent=39 // pred_fallthru
        _
    $region40: #{dino2_block.6} parent=5 // pred_fallthru
      _
  $region6: #{dino2_block.6} parent=0 // loop_footer
    %s13 = sadd.s32 1, %s9
  $region7: #{dino2_block.6} parent=0 // loop_footer_branch
    %8 = sbr.rel target = $region3
  $region8: #{dino2_block.6} parent=0 // loop_exit
    _

// kernel: dino2_block.7
$region0: #{dino2_block.7}
  #allocation0 [shape = 'u32[]', space=smem, size = 0x4, offset = 0x4, fixed_abs, tag = 'smem constant byte address 0x4 - core index']
  #allocation1 [shape = 'u32[144,128]{1,0:T(1,128)}', space=vmem, size = 0x12000, scoped, tag = 'internal scratch']
  %s0 = inlined_call_operand.vmem [shape: bf16[16,32], index: 0, kind: input, shape index: {}]
  %s1 = inlined_call_operand.vmem [shape: bf16[32,32], index: 1, kind: input, shape index: {}]
  %s2 = inlined_call_operand.vmem [shape: f32[1,32], index: 2, kind: input, shape index: {}]
  %s3 = inlined_call_operand.vmem [shape: f32[1,32], index: 3, kind: input, shape index: {}]
  %s4 = inlined_call_operand.vmem [shape: f32[16,32], index: 4, kind: input, shape index: {}]
  %s5 = inlined_call_operand.vmem [shape: f32[16,32], index: 5, kind: output, shape index: {}]
  %s6 = sld [smem:[#allocation0]]
  $region30: #{dino2_block.7} parent=0
    _
  %s8 = ssub.s32 1, %s6
  %s9 = scalar_select 0, %s8, %s6
  // Predicated region
  $region2: #{dino2_block.7} parent=0 // pred_check
    _
  $region3: #{dino2_block.7} parent=0 // pred_check_branch
    %11 = sbr.rel (0) target = $region5
  $region4: #{dino2_block.7} parent=0 // pred_region
    _
  $region5: #{dino2_block.7} parent=0 // pred_fallthru
    _
  // Predicated region
  $region6: #{dino2_block.7} parent=0 // pred_check
    _
  $region7: #{dino2_block.7} parent=0 // pred_check_branch
    %13 = sbr.rel (0) target = $region9
  $region8: #{dino2_block.7} parent=0 // pred_region
    _
  $region9: #{dino2_block.7} parent=0 // pred_fallthru
    _
  // Predicated region
  $region10: #{dino2_block.7} parent=0 // pred_check
    _
  $region11: #{dino2_block.7} parent=0 // pred_check_branch
    %15 = sbr.rel (0) target = $region13
  $region12: #{dino2_block.7} parent=0 // pred_region
    _
  $region13: #{dino2_block.7} parent=0 // pred_fallthru
    _
  // Predicated region
  $region14: #{dino2_block.7} parent=0 // pred_check
    _
  $region15: #{dino2_block.7} parent=0 // pred_check_branch
    %17 = sbr.rel (0) target = $region17
  $region16: #{dino2_block.7} parent=0 // pred_region
    _
  $region17: #{dino2_block.7} parent=0 // pred_fallthru
    _
  // Predicated region
  $region18: #{dino2_block.7} parent=0 // pred_check
    _
  $region19: #{dino2_block.7} parent=0 // pred_check_branch
    %19 = sbr.rel (0) target = $region21
  $region20: #{dino2_block.7} parent=0 // pred_region
    _
  $region21: #{dino2_block.7} parent=0 // pred_fallthru
    _
  %v21 = vld [vmem:[%s0] sm:$0xf]
  %v22 = vld [vmem:[%s0 + $0x4] sm:$0xf]
  %v23 = vld [vmem:[%s1] sm:$0xf]
  %v24 = vld [vmem:[%s1 + $0x4] sm:$0xf]
  %v25 = vld [vmem:[%s1 + $0x8] sm:$0xf]
  %v26 = vld [vmem:[%s1 + $0xc] sm:$0xf]
  %v27 = vld [vmem:[%s2] sm:$0x1]
  %v29 = vlaneseq
  %v30 = vshrl.u32 %v29, 7
  %v31 = vsub.s32 0, %v30
  %v32 = vrot.slane %v27, %v31
  %v36 = vunpack.c.l.b16 %v21
  %v37 = vunpack.c.l.b16 %v22
  %v38 = vpack.c.b16 %v37, %v36
  %v43 = vunpack.c.l.b16 %v23
  %v44 = vunpack.c.l.b16 %v24
  %v45 = vunpack.c.l.b16 %v25
  %v46 = vunpack.c.l.b16 %v26
  %v47 = vpack.c.b16 %v44, %v43
  %v48 = vpack.c.b16 %v46, %v45
  %vm51 = vcmask 261120
  %v53 = vsel %vm51, %v38, 0
  %55 = vmatprep.subr.bf16.mxu0 0
  %56 = vmatpush1.bf16.msra.mxu0 %v47
  %57 = vmatprep.subr.bf16.mxu0 0
  %58 = vmatpush1.bf16.msra.mxu0 %v48
  %59 = vmatprep.subr.bf16.mxu0 0
  %60 = vmatpush1.bf16.msra.mxu0 0
  %61 = vmatprep.subr.bf16.mxu0 0
  %62 = vmatpush1.bf16.msra.mxu0 0
  %63 = vmatprep.subr.bf16.mxu0 0
  %64 = vmatpush1.bf16.msra.mxu0 0
  %65 = vmatprep.subr.bf16.mxu0 0
  %66 = vmatpush1.bf16.msra.mxu0 0
  %67 = vmatprep.subr.bf16.mxu0 0
  %68 = vmatpush1.bf16.msra.mxu0 0
  %69 = vmatprep.subr.bf16.mxu0 0
  %70 = vmatpush1.bf16.msra.mxu0 0
  %71 = vmatprep.subr.bf16.mxu0 0
  %72 = vmatpush1.bf16.msra.mxu0 0
  %73 = vmatprep.subr.bf16.mxu0 0
  %74 = vmatpush1.bf16.msra.mxu0 0
  %75 = vmatprep.subr.bf16.mxu0 0
  %76 = vmatpush1.bf16.msra.mxu0 0
  %77 = vmatprep.subr.bf16.mxu0 0
  %78 = vmatpush1.bf16.msra.mxu0 0
  %79 = vmatprep.subr.bf16.mxu0 0
  %80 = vmatpush1.bf16.msra.mxu0 0
  %81 = vmatprep.subr.bf16.mxu0 0
  %82 = vmatpush1.bf16.msra.mxu0 0
  %83 = vmatprep.subr.bf16.mxu0 0
  %84 = vmatpush1.bf16.msra.mxu0 0
  %85 = vmatprep.subr.bf16.mxu0 0
  %86 = vmatpush1.bf16.msra.mxu0 0
  %87 = vmatprep.mubr.bf16.mxu0 0
  %88 = vmatmul.mubr.bf16.gmra.mrb[0].mxu0 %v53
  %v89 = vpop.f32.mrb[0].mxu0
  %v90 = vadd.f32 %v32, %v89
  %v91 = vpop.f32.mrb[0].mxu0
  %v92 = vpop.f32.mrb[0].mxu0
  %v93 = vadd.f32 %v32, %v92
  %v94 = vpop.f32.mrb[0].mxu0
  %95 = vdwg.mxu0
  %v96 = vld [vmem:[%s4] sm:$0xff]
  %v97 = vld [vmem:[%s4 + $0x8] sm:$0xff]
  %v98 = vld [vmem:[%s3] sm:$0x1]
  %v100 = vlaneseq
  %v101 = vshrl.u32 %v100, 7
  %v102 = vsub.s32 0, %v101
  %v103 = vrot.slane %v98, %v102
  %v105 = vmul.f32 %v103, %v90
  %v106 = vmul.f32 %v103, %v93
  %v107 = vadd.f32 %v96, %v105
  %v108 = vadd.f32 %v97, %v106
  %109 = vst.msk [vmem:[%s5] sm:$0xff] %vm51, %v107
  %110 = vst.msk [vmem:[%s5 + $0x8] sm:$0xff] %vm51, %v108
  // Predicated region
  $region22: #{dino2_block.7} parent=0 // pred_check
    _
  $region23: #{dino2_block.7} parent=0 // pred_check_branch
    %112 = sbr.rel (0) target = $region25
  $region24: #{dino2_block.7} parent=0 // pred_region
    _
  $region25: #{dino2_block.7} parent=0 // pred_fallthru
    _
  // Predicated region
  $region26: #{dino2_block.7} parent=0 // pred_check
    _
  $region27: #{dino2_block.7} parent=0 // pred_check_branch
    %114 = sbr.rel (0) target = $region29
  $region28: #{dino2_block.7} parent=0 // pred_region
    _
  $region29: #{dino2_block.7} parent=0 // pred_fallthru
    _

// kernel: dino2_block.8
$region0: #{dino2_block.8}
  #allocation0 [shape = 'u32[]', space=smem, size = 0x4, offset = 0x4, fixed_abs, tag = 'smem constant byte address 0x4 - core index']
  #allocation1 [shape = 'u32[144,128]{1,0:T(1,128)}', space=vmem, size = 0x12000, scoped, tag = 'internal scratch']
  %s0 = inlined_call_operand.vmem [shape: f32[16,32], index: 0, kind: input, shape index: {}]
  %s1 = inlined_call_operand.vmem [shape: f32[1,32], index: 1, kind: input, shape index: {}]
  %s2 = inlined_call_operand.vmem [shape: f32[1,32], index: 2, kind: input, shape index: {}]
  %s3 = inlined_call_operand.vmem [shape: bf16[32,88], index: 3, kind: input, shape index: {}]
  %s4 = inlined_call_operand.vmem [shape: f32[1,88], index: 4, kind: input, shape index: {}]
  %s5 = inlined_call_operand.vmem [shape: bf16[32,88], index: 5, kind: input, shape index: {}]
  %s6 = inlined_call_operand.vmem [shape: f32[1,88], index: 6, kind: input, shape index: {}]
  %s7 = inlined_call_operand.vmem [shape: bf16[16,88], index: 7, kind: output, shape index: {}]
  %s8 = sld [smem:[#allocation0]]
  $region38: #{dino2_block.8} parent=0
    _
  %s10 = ssub.s32 1, %s8
  %s11 = scalar_select 0, %s10, %s8
  // Predicated region
  $region2: #{dino2_block.8} parent=0 // pred_check
    _
  $region3: #{dino2_block.8} parent=0 // pred_check_branch
    %13 = sbr.rel (0) target = $region5
  $region4: #{dino2_block.8} parent=0 // pred_region
    _
  $region5: #{dino2_block.8} parent=0 // pred_fallthru
    _
  // Predicated region
  $region6: #{dino2_block.8} parent=0 // pred_check
    _
  $region7: #{dino2_block.8} parent=0 // pred_check_branch
    %15 = sbr.rel (0) target = $region9
  $region8: #{dino2_block.8} parent=0 // pred_region
    _
  $region9: #{dino2_block.8} parent=0 // pred_fallthru
    _
  // Predicated region
  $region10: #{dino2_block.8} parent=0 // pred_check
    _
  $region11: #{dino2_block.8} parent=0 // pred_check_branch
    %17 = sbr.rel (0) target = $region13
  $region12: #{dino2_block.8} parent=0 // pred_region
    _
  $region13: #{dino2_block.8} parent=0 // pred_fallthru
    _
  // Predicated region
  $region14: #{dino2_block.8} parent=0 // pred_check
    _
  $region15: #{dino2_block.8} parent=0 // pred_check_branch
    %19 = sbr.rel (0) target = $region17
  $region16: #{dino2_block.8} parent=0 // pred_region
    _
  $region17: #{dino2_block.8} parent=0 // pred_fallthru
    _
  // Predicated region
  $region18: #{dino2_block.8} parent=0 // pred_check
    _
  $region19: #{dino2_block.8} parent=0 // pred_check_branch
    %21 = sbr.rel (0) target = $region21
  $region20: #{dino2_block.8} parent=0 // pred_region
    _
  $region21: #{dino2_block.8} parent=0 // pred_fallthru
    _
  // Predicated region
  $region22: #{dino2_block.8} parent=0 // pred_check
    _
  $region23: #{dino2_block.8} parent=0 // pred_check_branch
    %23 = sbr.rel (0) target = $region25
  $region24: #{dino2_block.8} parent=0 // pred_region
    _
  $region25: #{dino2_block.8} parent=0 // pred_fallthru
    _
  // Predicated region
  $region26: #{dino2_block.8} parent=0 // pred_check
    _
  $region27: #{dino2_block.8} parent=0 // pred_check_branch
    %25 = sbr.rel (0) target = $region29
  $region28: #{dino2_block.8} parent=0 // pred_region
    _
  $region29: #{dino2_block.8} parent=0 // pred_fallthru
    _
  %v27 = vld [vmem:[%s0] sm:$0xff]
  %v28 = vld [vmem:[%s0 + $0x8] sm:$0xff]
  %vm29 = vcmask 261120
  %v30 = vsel %vm29, %v27, 0.0
  %31 = vadd.xlane.f32.xlu0 %v30
  %v32 = vpop.xlane.xlu0 %31
  %v33 = vsel %vm29, %v28, 0.0
  %34 = vadd.xlane.f32.xlu0 %v33
  %v35 = vpop.xlane.xlu0 %34
  %v36 = vrcp.pop 32.0
  %v37 = vmul.f32 %v32, %v36
  %v38 = vmul.f32 %v35, %v36
  %v39 = vsub.f32 %v27, %v37
  %v40 = vsub.f32 %v28, %v38
  %v41 = vmul.f32 %v39, %v39
  %v42 = vmul.f32 %v40, %v40
  %v43 = vsel %vm29, %v41, 0.0
  %44 = vadd.xlane.f32.xlu0 %v43
  %v45 = vpop.xlane.xlu0 %44
  %v46 = vsel %vm29, %v42, 0.0
  %47 = vadd.xlane.f32.xlu0 %v46
  %v48 = vpop.xlane.xlu0 %47
  %v49 = vmul.f32 %v45, %v36
  %v50 = vmul.f32 %v48, %v36
  %v51 = vadd.f32 %v49, 1e-06
  %v52 = vadd.f32 %v50, 1e-06
  %v53 = vrsqrt.pop %v51
  %v54 = vrsqrt.pop %v52
  %v55 = vmul.f32 %v39, %v53
  %v56 = vmul.f32 %v40, %v54
  %v57 = vld [vmem:[%s1] sm:$0x1]
  %v59 = vlaneseq
  %v60 = vshrl.u32 %v59, 7
  %v61 = vsub.s32 0, %v60
  %v62 = vrot.slane %v57, %v61
  %v64 = vmul.f32 %v55, %v62
  %v65 = vmul.f32 %v56, %v62
  %v66 = vld [vmem:[%s2] sm:$0x1]
  %v68 = vlaneseq
  %v69 = vshrl.u32 %v68, 7
  %v70 = vsub.s32 0, %v69
  %v71 = vrot.slane %v66, %v70
  %v73 = vadd.f32 %v64, %v71
  %v74 = vadd.f32 %v65, %v71
  %v75 = vpack.c.bf16 %v74, %v73
  %v76 = vld [vmem:[%s3] sm:$0xf]
  %v77 = vld [vmem:[%s3 + $0x4] sm:$0xf]
  %v78 = vld [vmem:[%s3 + $0x8] sm:$0xf]
  %v79 = vld [vmem:[%s3 + $0xc] sm:$0xf]
  %v80 = vld [vmem:[%s4] sm:$0x1]
  %v82 = vlaneseq
  %v83 = vshrl.u32 %v82, 7
  %v84 = vsub.s32 0, %v83
  %v85 = vrot.slane %v80, %v84
  %v91 = vunpack.c.l.b16 %v76
  %v92 = vunpack.c.l.b16 %v77
  %v93 = vunpack.c.l.b16 %v78
  %v94 = vunpack.c.l.b16 %v79
  %v95 = vpack.c.b16 %v92, %v91
  %v96 = vpack.c.b16 %v94, %v93
  %v100 = vsel %vm29, %v75, 0
  %102 = vmatprep.subr.bf16.mxu0 0
  %103 = vmatpush1.bf16.msra.mxu0 %v95
  %104 = vmatprep.subr.bf16.mxu0 0
  %105 = vmatpush1.bf16.msra.mxu0 %v96
  %106 = vmatprep.subr.bf16.mxu0 0
  %107 = vmatpush1.bf16.msra.mxu0 0
  %108 = vmatprep.subr.bf16.mxu0 0
  %109 = vmatpush1.bf16.msra.mxu0 0
  %110 = vmatprep.subr.bf16.mxu0 0
  %111 = vmatpush1.bf16.msra.mxu0 0
  %112 = vmatprep.subr.bf16.mxu0 0
  %113 = vmatpush1.bf16.msra.mxu0 0
  %114 = vmatprep.subr.bf16.mxu0 0
  %115 = vmatpush1.bf16.msra.mxu0 0
  %116 = vmatprep.subr.bf16.mxu0 0
  %117 = vmatpush1.bf16.msra.mxu0 0
  %118 = vmatprep.subr.bf16.mxu0 0
  %119 = vmatpush1.bf16.msra.mxu0 0
  %120 = vmatprep.subr.bf16.mxu0 0
  %121 = vmatpush1.bf16.msra.mxu0 0
  %122 = vmatprep.subr.bf16.mxu0 0
  %123 = vmatpush1.bf16.msra.mxu0 0
  %124 = vmatprep.subr.bf16.mxu0 0
  %125 = vmatpush1.bf16.msra.mxu0 0
  %126 = vmatprep.subr.bf16.mxu0 0
  %127 = vmatpush1.bf16.msra.mxu0 0
  %128 = vmatprep.subr.bf16.mxu0 0
  %129 = vmatpush1.bf16.msra.mxu0 0
  %130 = vmatprep.subr.bf16.mxu0 0
  %131 = vmatpush1.bf16.msra.mxu0 0
  %132 = vmatprep.subr.bf16.mxu0 0
  %133 = vmatpush1.bf16.msra.mxu0 0
  %134 = vmatprep.mubr.bf16.mxu0 0
  %135 = vmatmul.mubr.bf16.gmra.mrb[0].mxu0 %v100
  %v136 = vpop.f32.mrb[0].mxu0
  %v137 = vadd.f32 %v85, %v136
  %v138 = vpop.f32.mrb[0].mxu0
  %v139 = vpop.f32.mrb[0].mxu0
  %v140 = vadd.f32 %v85, %v139
  %v141 = vpop.f32.mrb[0].mxu0
  %142 = vdwg.mxu0
  %v143 = vld [vmem:[%s5] sm:$0xf]
  %v144 = vld [vmem:[%s5 + $0x4] sm:$0xf]
  %v145 = vld [vmem:[%s5 + $0x8] sm:$0xf]
  %v146 = vld [vmem:[%s5 + $0xc] sm:$0xf]
  %v147 = vld [vmem:[%s6] sm:$0x1]
  %v149 = vlaneseq
  %v150 = vshrl.u32 %v149, 7
  %v151 = vsub.s32 0, %v150
  %v152 = vrot.slane %v147, %v151
  %v158 = vunpack.c.l.b16 %v143
  %v159 = vunpack.c.l.b16 %v144
  %v160 = vunpack.c.l.b16 %v145
  %v161 = vunpack.c.l.b16 %v146
  %v162 = vpack.c.b16 %v159, %v158
  %v163 = vpack.c.b16 %v161, %v160
  %166 = vmatprep.subr.bf16.mxu0 0
  %167 = vmatpush1.bf16.msra.mxu0 %v162
  %168 = vmatprep.subr.bf16.mxu0 0
  %169 = vmatpush1.bf16.msra.mxu0 %v163
  %170 = vmatprep.subr.bf16.mxu0 0
  %171 = vmatpush1.bf16.msra.mxu0 0
  %172 = vmatprep.subr.bf16.mxu0 0
  %173 = vmatpush1.bf16.msra.mxu0 0
  %174 = vmatprep.subr.bf16.mxu0 0
  %175 = vmatpush1.bf16.msra.mxu0 0
  %176 = vmatprep.subr.bf16.mxu0 0
  %177 = vmatpush1.bf16.msra.mxu0 0
  %178 = vmatprep.subr.bf16.mxu0 0
  %179 = vmatpush1.bf16.msra.mxu0 0
  %180 = vmatprep.subr.bf16.mxu0 0
  %181 = vmatpush1.bf16.msra.mxu0 0
  %182 = vmatprep.subr.bf16.mxu0 0
  %183 = vmatpush1.bf16.msra.mxu0 0
  %184 = vmatprep.subr.bf16.mxu0 0
  %185 = vmatpush1.bf16.msra.mxu0 0
  %186 = vmatprep.subr.bf16.mxu0 0
  %187 = vmatpush1.bf16.msra.mxu0 0
  %188 = vmatprep.subr.bf16.mxu0 0
  %189 = vmatpush1.bf16.msra.mxu0 0
  %190 = vmatprep.subr.bf16.mxu0 0
  %191 = vmatpush1.bf16.msra.mxu0 0
  %192 = vmatprep.subr.bf16.mxu0 0
  %193 = vmatpush1.bf16.msra.mxu0 0
  %194 = vmatprep.subr.bf16.mxu0 0
  %195 = vmatpush1.bf16.msra.mxu0 0
  %196 = vmatprep.subr.bf16.mxu0 0
  %197 = vmatpush1.bf16.msra.mxu0 0
  %198 = vmatprep.mubr.bf16.mxu0 0
  %199 = vmatmul.mubr.bf16.gmra.mrb[0].mxu0 %v100
  %v200 = vpop.f32.mrb[0].mxu0
  %v201 = vadd.f32 %v152, %v200
  %v202 = vpop.f32.mrb[0].mxu0
  %v203 = vpop.f32.mrb[0].mxu0
  %v204 = vadd.f32 %v152, %v203
  %v205 = vpop.f32.mrb[0].mxu0
  %206 = vdwg.mxu0
  %v207 = vsub.f32 0.0, %v137
  %v208 = vsub.f32 0.0, %v140
  %v209 = vmul.f32 %v207, 1.442695
  %v210 = vpow.pop %v209
  %v211 = vmul.f32 %v208, 1.442695
  %v212 = vpow.pop %v211
  %v213 = vadd.f32 %v210, 1.0
  %v214 = vadd.f32 %v212, 1.0
  %v215 = vrcp.pop %v213
  %v216 = vrcp.pop %v214
  %v217 = vmul.f32 %v137, %v215
  %v218 = vmul.f32 %v140, %v216
  %v219 = vmul.f32 %v217, %v201
  %v220 = vmul.f32 %v218, %v204
  %v221 = vpack.c.bf16 %v220, %v219
  %v223 = vunpack.c.l.b16 %v221
  %v224 = vunpack.c.h.b16 %v221
  %v225 = vpack.c.b16 %v223, %v223
  %v226 = vpack.c.b16 %v224, %v224
  %vm229 = vcmask 715776
  %230 = vst.msk [vmem:[%s7] sm:$0xf] %vm229, %v225
  %231 = vst.msk [vmem:[%s7 + $0x4] sm:$0xf] %vm229, %v226
  // Predicated region
  $region30: #{dino2_block.8} parent=0 // pred_check
    _
  $region31: #{dino2_block.8} parent=0 // pred_check_branch
    %233 = sbr.rel (0) target = $region33
  $region32: #{dino2_block.8} parent=0 // pred_region
    _
  $region33: #{dino2_block.8} parent=0 // pred_fallthru
    _
  // Predicated region
  $region34: #{dino2_block.8} parent=0 // pred_check
    _
  $region35: #{dino2_block.8} parent=0 // pred_check_branch
    %235 = sbr.rel (0) target = $region37
  $region36: #{dino2_block.8} parent=0 // pred_region
    _
  $region37: #{dino2_block.8} parent=0 // pred_fallthru
    _

// kernel: dino2_block.9
$region0: #{dino2_block.9}
  #allocation0 [shape = 'u32[]', space=smem, size = 0x4, offset = 0x4, fixed_abs, tag = 'smem constant byte address 0x4 - core index']
  #allocation1 [shape = 'u32[144,128]{1,0:T(1,128)}', space=vmem, size = 0x12000, scoped, tag = 'internal scratch']
  %s0 = inlined_call_operand.vmem [shape: bf16[16,88], index: 0, kind: input, shape index: {}]
  %s1 = inlined_call_operand.vmem [shape: bf16[88,32], index: 1, kind: input, shape index: {}]
  %s2 = inlined_call_operand.vmem [shape: f32[1,32], index: 2, kind: input, shape index: {}]
  %s3 = inlined_call_operand.vmem [shape: f32[1,32], index: 3, kind: input, shape index: {}]
  %s4 = inlined_call_operand.vmem [shape: f32[16,32], index: 4, kind: input, shape index: {}]
  %s5 = inlined_call_operand.hbm [shape: f32[16,32], index: 5, kind: output, shape index: {}]
  %s6 = sld [smem:[#allocation0]]
  $region30: #{dino2_block.9} parent=0
    _
  %s8 = ssub.s32 1, %s6
  %s9 = scalar_select 0, %s8, %s6
  $region1: #{dino2_block.9} parent=0
    #allocation2 [shape = 'u8[8192]{0}', space=vmem, size = 0x2000, scoped, tag = 'output window, operand 0, single buffered']
    #allocation3 [shape = 's32[1]{0}', space=sflag, size = 0x4, scoped, tag = 'scoped memory for dino2_block.9']
    %10 = vsyncpa [#allocation3], 0
    // Predicated region
    $region2: #{dino2_block.9} parent=1 // pred_check
      _
    $region3: #{dino2_block.9} parent=1 // pred_check_branch
      %12 = sbr.rel (0) target = $region5
    $region4: #{dino2_block.9} parent=1 // pred_region
      _
    $region5: #{dino2_block.9} parent=1 // pred_fallthru
      _
    // Predicated region
    $region6: #{dino2_block.9} parent=1 // pred_check
      _
    $region7: #{dino2_block.9} parent=1 // pred_check_branch
      %14 = sbr.rel (0) target = $region9
    $region8: #{dino2_block.9} parent=1 // pred_region
      _
    $region9: #{dino2_block.9} parent=1 // pred_fallthru
      _
    // Predicated region
    $region10: #{dino2_block.9} parent=1 // pred_check
      _
    $region11: #{dino2_block.9} parent=1 // pred_check_branch
      %16 = sbr.rel (0) target = $region13
    $region12: #{dino2_block.9} parent=1 // pred_region
      _
    $region13: #{dino2_block.9} parent=1 // pred_fallthru
      _
    // Predicated region
    $region14: #{dino2_block.9} parent=1 // pred_check
      _
    $region15: #{dino2_block.9} parent=1 // pred_check_branch
      %18 = sbr.rel (0) target = $region17
    $region16: #{dino2_block.9} parent=1 // pred_region
      _
    $region17: #{dino2_block.9} parent=1 // pred_fallthru
      _
    // Predicated region
    $region18: #{dino2_block.9} parent=1 // pred_check
      _
    $region19: #{dino2_block.9} parent=1 // pred_check_branch
      %20 = sbr.rel (0) target = $region21
    $region20: #{dino2_block.9} parent=1 // pred_region
      _
    $region21: #{dino2_block.9} parent=1 // pred_fallthru
      _
    %v22 = vld [vmem:[%s0] sm:$0xf]
    %v23 = vld [vmem:[%s0 + $0x4] sm:$0xf]
    %v24 = vld [vmem:[%s1] sm:$0xf]
    %v25 = vld [vmem:[%s1 + $0x4] sm:$0xf]
    %v26 = vld [vmem:[%s1 + $0x8] sm:$0xf]
    %v27 = vld [vmem:[%s1 + $0xc] sm:$0xf]
    %v28 = vld [vmem:[%s1 + $0x10] sm:$0xf]
    %v29 = vld [vmem:[%s1 + $0x14] sm:$0xf]
    %v30 = vld [vmem:[%s1 + $0x18] sm:$0xf]
    %v31 = vld [vmem:[%s1 + $0x1c] sm:$0xf]
    %v32 = vld [vmem:[%s1 + $0x20] sm:$0xf]
    %v33 = vld [vmem:[%s1 + $0x24] sm:$0xf]
    %v34 = vld [vmem:[%s1 + $0x28] sm:$0xf]
    %v35 = vld [vmem:[%s2] sm:$0x1]
    %v37 = vlaneseq
    %v38 = vshrl.u32 %v37, 7
    %v39 = vsub.s32 0, %v38
    %v40 = vrot.slane %v35, %v39
    %v44 = vunpack.c.l.b16 %v22
    %v45 = vunpack.c.l.b16 %v23
    %v46 = vpack.c.b16 %v45, %v44
    %v58 = vunpack.c.l.b16 %v24
    %v59 = vunpack.c.l.b16 %v25
    %v60 = vunpack.c.l.b16 %v26
    %v61 = vunpack.c.l.b16 %v27
    %v62 = vunpack.c.l.b16 %v28
    %v63 = vunpack.c.l.b16 %v29
    %v64 = vunpack.c.l.b16 %v30
    %v65 = vunpack.c.l.b16 %v31
    %v66 = vunpack.c.l.b16 %v32
    %v67 = vunpack.c.l.b16 %v33
    %v68 = vunpack.c.l.b16 %v34
    %v69 = vpack.c.b16 %v59, %v58
    %v70 = vpack.c.b16 %v61, %v60
    %v71 = vpack.c.b16 %v63, %v62
    %v72 = vpack.c.b16 %v65, %v64
    %v73 = vpack.c.b16 %v67, %v66
    %v74 = vpack.c.b16 %v68, %v68
    %vm80 = vcmask 719872
    %v82 = vsel %vm80, %v46, 0
    %vm84 = vcmask 1043456
    %v86 = vsel %vm84, %v74, 0
    %88 = vmatprep.subr.bf16.mxu0 0
    %89 = vmatpush1.bf16.msra.mxu0 %v69
    %90 = vmatprep.subr.bf16.mxu0 0
    %91 = vmatpush1.bf16.msra.mxu0 %v70
    %92 = vmatprep.subr.bf16.mxu0 0
    %93 = vmatpush1.bf16.msra.mxu0 %v71
    %94 = vmatprep.subr.bf16.mxu0 0
    %95 = vmatpush1.bf16.msra.mxu0 %v72
    %96 = vmatprep.subr.bf16.mxu0 0
    %97 = vmatpush1.bf16.msra.mxu0 %v73
    %98 = vmatprep.subr.bf16.mxu0 0
    %99 = vmatpush1.bf16.msra.mxu0 %v86
    %100 = vmatprep.subr.bf16.mxu0 0
    %101 = vmatpush1.bf16.msra.mxu0 0
    %102 = vmatprep.subr.bf16.mxu0 0
    %103 = vmatpush1.bf16.msra.mxu0 0
    %104 = vmatprep.subr.bf16.mxu0 0
    %105 = vmatpush1.bf16.msra.mxu0 0
    %106 = vmatprep.subr.bf16.mxu0 0
    %107 = vmatpush1.bf16.msra.mxu0 0
    %108 = vmatprep.subr.bf16.mxu0 0
    %109 = vmatpush1.bf16.msra.mxu0 0
    %110 = vmatprep.subr.bf16.mxu0 0
    %111 = vmatpush1.bf16.msra.mxu0 0
    %112 = vmatprep.subr.bf16.mxu0 0
    %113 = vmatpush1.bf16.msra.mxu0 0
    %114 = vmatprep.subr.bf16.mxu0 0
    %115 = vmatpush1.bf16.msra.mxu0 0
    %116 = vmatprep.subr.bf16.mxu0 0
    %117 = vmatpush1.bf16.msra.mxu0 0
    %118 = vmatprep.subr.bf16.mxu0 0
    %119 = vmatpush1.bf16.msra.mxu0 0
    %120 = vmatprep.mubr.bf16.mxu0 0
    %121 = vmatmul.mubr.bf16.gmra.mrb[0].mxu0 %v82
    %v122 = vpop.f32.mrb[0].mxu0
    %v123 = vadd.f32 %v40, %v122
    %v124 = vpop.f32.mrb[0].mxu0
    %v125 = vpop.f32.mrb[0].mxu0
    %v126 = vadd.f32 %v40, %v125
    %v127 = vpop.f32.mrb[0].mxu0
    %128 = vdwg.mxu0
    %v129 = vld [vmem:[%s4] sm:$0xff]
    %v130 = vld [vmem:[%s4 + $0x8] sm:$0xff]
    %v131 = vld [vmem:[%s3] sm:$0x1]
    %v133 = vlaneseq
    %v134 = vshrl.u32 %v133, 7
    %v135 = vsub.s32 0, %v134
    %v136 = vrot.slane %v131, %v135
    %v138 = vmul.f32 %v136, %v123
    %v139 = vmul.f32 %v136, %v126
    %v140 = vadd.f32 %v129, %v138
    %v141 = vadd.f32 %v130, %v139
    %vm142 = vcmask 261120
    %143 = vst.msk [vmem:[#allocation2] sm:$0xff] %vm142, %v140
    %144 = vst.msk [vmem:[#allocation2 + $0x8] sm:$0xff] %vm142, %v141
    // Predicated region
    $region22: #{dino2_block.9} parent=1 // pred_check
      _
    $region23: #{dino2_block.9} parent=1 // pred_check_branch
      %146 = sbr.rel (0) target = $region25
    $region24: #{dino2_block.9} parent=1 // pred_region
      %s148 = ssub.s32 256, 256
      %149 = vsyncadd [#allocation3], %s148
      %s150 = sshll.u32 [#allocation2], 4
      %s151 = int_to_ptr.vmem [resolvable:$true] %s150
      %156 = dma.vmem_to_hbm [thread:$0]  %s151, 256, %s5, [#allocation3], 128, 128, 8
    $region25: #{dino2_block.9} parent=1 // pred_fallthru
      _
    // Predicated region
    $region26: #{dino2_block.9} parent=1 // pred_check
      _
    $region27: #{dino2_block.9} parent=1 // pred_check_branch
      %158 = sbr.rel (0) target = $region29
    $region28: #{dino2_block.9} parent=1 // pred_region
      %159 = dma.done [#allocation3], 256
    $region29: #{dino2_block.9} parent=1 // pred_fallthru
      _
    %160 = vsyncpa [#allocation3], 1

</llo_original>
